<compile_context>
chip_gen: v7x
topology: tpu7x:2x2x1
jax: 0.10.0
libtpu: 0.0.40
codegen_flags: <defaults>
</compile_context>

<pallas_src>
import math

import jax
import jax.numpy as jnp
from jax.experimental import pallas as pl
from jax.experimental.pallas import tpu as pltpu


def _gelu(x):
    # tanh-approximate GELU (matches torch.nn.GELU(approximate='tanh')).
    c = math.sqrt(2.0 / math.pi)
    return 0.5 * x * (1.0 + jnp.tanh(c * (x + 0.044715 * x * x * x)))


# ----------------------------------------------------------------------------
# Kernel: one image per grid step, all MBConv blocks fused in a static loop.
# Tensors inside are lane-dense 2-D tiles:
#   activation:  (C,    R) = (8,  256)   R = H*W
#   hidden:      (Chid, R) = (32, 256)
# ----------------------------------------------------------------------------
def _make_conv_layer_kernel(depth, W, R):
    def kernel(x_ref, masks_ref, w1_ref, b1_ref, kdw_ref, bd_ref,
               w3_ref, b3_ref, o_ref):
        # Edge masks (0/1 floats), one row per condition, resident in VMEM:
        m_w0 = masks_ref[0:1, :]   # 0 where w == 0
        m_wL = masks_ref[1:2, :]   # 0 where w == W-1
        m_h0 = masks_ref[2:3, :]   # 0 where h == 0
        m_hL = masks_ref[3:4, :]   # 0 where h == H-1

        x = x_ref[0]                                   # (C, R) f32, shortcut

        for d in range(depth):                         # static depth unroll
            # --- conv1: 1x1 conv + folded BN (bf16 MXU, f32 acc) + GELU ----
            h = jnp.dot(w1_ref[d], x.astype(jnp.bfloat16),
                        preferred_element_type=jnp.float32)
            h = _gelu(h + b1_ref[d])                   # (Chid, R) f32

            # --- conv2: 3x3 depthwise, stride 1, pad 1 ----------------------
            # W-direction +-1 neighbours via lane rolls (XLU) + edge masks.
            k = kdw_ref[d]                             # (Chid, 9) f32 taps
            t_m = pltpu.roll(h, 1, axis=1) * m_w0      # in[.., w-1]
            t_p = pltpu.roll(h, R - 1, axis=1) * m_wL  # in[.., w+1]

            # H-direction +-1 via lane rolls by +-W, accumulated incrementally.
            a0 = k[:, 0:1] * t_m + k[:, 1:2] * h + k[:, 2:3] * t_p
            dw = pltpu.roll(a0, W, axis=1) * m_h0      # a0 taken at h-1
            a1 = k[:, 3:4] * t_m + k[:, 4:5] * h + k[:, 5:6] * t_p
            dw = dw + a1
            a2 = k[:, 6:7] * t_m + k[:, 7:8] * h + k[:, 8:9] * t_p
            dw = dw + pltpu.roll(a2, R - W, axis=1) * m_hL   # a2 at h+1
            h2 = _gelu(dw + bd_ref[d])                 # (Chid, R) f32

            # --- conv3: 1x1 projection + folded BN, residual add, GELU ------
            y = jnp.dot(w3_ref[d], h2.astype(jnp.bfloat16),
                        preferred_element_type=jnp.float32)
            x = _gelu(y + b3_ref[d] + x)               # (C, R) f32

        o_ref[0] = x                                   # single lane-dense store

    return kernel


# ----------------------------------------------------------------------------
# Wrapper: packs folded weights (depth-stacked, resident) and launches one
# pallas_call for the whole ConvLayer.
# ----------------------------------------------------------------------------
def _edge_masks(H, W):
    r = jnp.arange(H * W)
    w = r % W
    h = r // W
    return jnp.stack([(w != 0), (w != W - 1),
                      (h != 0), (h != H - 1)]).astype(jnp.float32)   # (4, R)


def pack_conv_layer_params(params_list):
    bf16 = lambda a: jnp.asarray(a, jnp.bfloat16)
    f32 = lambda a: jnp.asarray(a, jnp.float32)
    w1 = jnp.stack([bf16(p["w1"]) for p in params_list])             # (D,Chid,C)
    b1 = jnp.stack([f32(p["b1"])[:, None] for p in params_list])     # (D,Chid,1)
    kdw = jnp.stack([f32(p["wd"]).reshape(p["wd"].shape[0], 9)
                     for p in params_list])                          # (D,Chid,9)
    bd = jnp.stack([f32(p["bd"])[:, None] for p in params_list])     # (D,Chid,1)
    w3 = jnp.stack([bf16(p["w3"]) for p in params_list])             # (D,C,Chid)
    b3 = jnp.stack([f32(p["b3"])[:, None] for p in params_list])     # (D,C,1)
    return w1, b1, kdw, bd, w3, b3


def conv_layer_forward(x, params_list):
    """ConvLayer.forward (downsample=None). x: (B, C, H, W) float32, NCHW."""
    B, C, H, W = x.shape
    R = H * W
    depth = len(params_list)
    Chid = params_list[0]["w1"].shape[0]

    w1, b1, kdw, bd, w3, b3 = pack_conv_layer_params(params_list)
    masks = _edge_masks(H, W)
    x2 = x.reshape(B, C, R)

    # Advisory cost estimate for the whole call.
    per_block = (2 * Chid * C * R            # conv1
                 + 2 * C * Chid * R          # conv3
                 + 17 * Chid * R             # depthwise taps + adds
                 + 6 * Chid * R)             # masks / residual / misc
    flops = int(B * depth * per_block)
    transcendentals = int(B * depth * (2 * Chid * R + C * R))
    bytes_accessed = int(4 * (2 * B * C * R + int(masks.size))
                         + 2 * (int(w1.size) + int(w3.size))
                         + 4 * (int(kdw.size) + int(b1.size)
                                + int(bd.size) + int(b3.size)))

    kernel = _make_conv_layer_kernel(depth, W, R)

    y2 = pl.pallas_call(
        kernel,
        out_shape=jax.ShapeDtypeStruct((B, C, R), jnp.float32),
        grid=(B,),
        in_specs=[
            # activation: one image per grid step, lane-dense (C, H*W)
            pl.BlockSpec((1, C, R), lambda b: (b, 0, 0)),
            # edge masks: constant index -> DMA'd once, stay resident
            pl.BlockSpec((4, R), lambda b: (0, 0)),
            # per-block weights/biases: full-depth blocks, resident for the call
            pl.BlockSpec((depth, Chid, C), lambda b: (0, 0, 0)),
            pl.BlockSpec((depth, Chid, 1), lambda b: (0, 0, 0)),
            pl.BlockSpec((depth, Chid, 9), lambda b: (0, 0, 0)),
            pl.BlockSpec((depth, Chid, 1), lambda b: (0, 0, 0)),
            pl.BlockSpec((depth, C, Chid), lambda b: (0, 0, 0)),
            pl.BlockSpec((depth, C, 1), lambda b: (0, 0, 0)),
        ],
        out_specs=pl.BlockSpec((1, C, R), lambda b: (b, 0, 0)),
        compiler_params=pltpu.CompilerParams(
            dimension_semantics=("parallel",)),
        cost_estimate=pl.CostEstimate(flops=flops,
                                      transcendentals=transcendentals,
                                      bytes_accessed=bytes_accessed),
    )(x2, masks, w1, b1, kdw, bd, w3, b3)

    return y2.reshape(B, C, H, W)


# ----------------------------------------------------------------------------
# Deterministic parameter init + BN folding (glue, plain JAX).
# ----------------------------------------------------------------------------
def _bn_fold(k, n, eps=1e-5):
    k0, k1, k2, k3 = jax.random.split(k, 4)
    gamma = jax.random.uniform(k0, (n,), minval=0.5, maxval=1.5)
    beta = 0.1 * jax.random.normal(k1, (n,))
    mean = 0.1 * jax.random.normal(k2, (n,))
    var = jax.random.uniform(k3, (n,), minval=0.5, maxval=1.5)
    scale = gamma / jnp.sqrt(var + eps)
    bias = beta - mean * scale
    return scale, bias


def init_mbconv_params(key, dim, hidden):
    k = jax.random.split(key, 6)
    # conv1: torch weight (hidden, dim, 1, 1)
    w1_t = 0.1 * jax.random.normal(k[0], (hidden, dim))
    s1, b1 = _bn_fold(k[1], hidden)
    w1 = w1_t * s1[:, None]                                # (hidden, dim)
    # conv2: depthwise, torch weight (hidden, 1, 3, 3)
    wd_t = 0.1 * jax.random.normal(k[2], (hidden, 3, 3))
    s2, bd = _bn_fold(k[3], hidden)
    wd = wd_t * s2[:, None, None]                          # (hidden, 3, 3)
    # conv3: torch weight (dim, hidden, 1, 1)
    w3_t = 0.1 * jax.random.normal(k[4], (dim, hidden))
    s3, b3 = _bn_fold(k[5], dim)
    w3 = w3_t * s3[:, None]                                # (dim, hidden)
    f32 = lambda a: jnp.asarray(a, jnp.float32)
    return dict(w1=f32(w1), b1=f32(b1), wd=f32(wd), bd=f32(bd),
                w3=f32(w3), b3=f32(b3))


# ----------------------------------------------------------------------------
# Pure-JAX reference (NCHW, f32, same folded math).
# ----------------------------------------------------------------------------
def mbconv_ref(x, p):
    B, C, H, W = x.shape
    h = _gelu(jnp.einsum("bchw,dc->bdhw", x, p["w1"],
                         precision=jax.lax.Precision.HIGHEST)
              + p["b1"][None, :, None, None])
    hp = jnp.pad(h, ((0, 0), (0, 0), (1, 1), (1, 1)))
    acc = jnp.zeros_like(h)
    for j in range(3):
        for i in range(3):
            acc = acc + (hp[:, :, j:j + H, i:i + W]
                         * p["wd"][:, j, i][None, :, None, None])
    h2 = _gelu(acc + p["bd"][None, :, None, None])
    y = (jnp.einsum("bdhw,cd->bchw", h2, p["w3"],
                    precision=jax.lax.Precision.HIGHEST)
         + p["b3"][None, :, None, None])
    return _gelu(y + x)


def conv_layer_ref(x, block_params_list):
    for p in block_params_list:
        x = mbconv_ref(x, p)
    return x


if __name__ == "__main__":
    # ConvLayer(dim=8, input_resolution=(16,16), depth=2, activation=GELU,
    #           conv_expand_ratio=4.0, downsample=None)
    B, dim, H, W = 2, 8, 16, 16
    depth, expand_ratio = 2, 4.0
    hidden = int(dim * expand_ratio)

    root = jax.random.PRNGKey(0)
    kx, *kblocks = jax.random.split(root, 1 + depth)
    x = jax.random.normal(kx, (B, dim, H, W), dtype=jnp.float32)   # NCHW
    params = [init_mbconv_params(kb, dim, hidden) for kb in kblocks]

    y = conv_layer_forward(x, params)
    y = jax.block_until_ready(y)

    y_ref = conv_layer_ref(x, params)
    assert y.shape == (B, dim, H, W)
    max_err = float(jnp.max(jnp.abs(y - y_ref)))
    # bf16 matmul operands (f32 accumulation) across 2 chained blocks.
    assert jnp.allclose(y, y_ref, rtol=2e-2, atol=2e-2), (
        "mismatch: max abs err = %e" % max_err)

    print("KERNEL_OK")
</pallas_src>

<mosaic_0001>
module attributes {stable_mosaic.version = 11 : i64} {
  func.func @kernel(%arg0: i32, %arg1: memref<1x8x256xf32, #tpu.memory_space<vmem>>, %arg2: memref<4x256xf32, #tpu.memory_space<vmem>>, %arg3: memref<2x32x8xbf16, #tpu.memory_space<vmem>>, %arg4: memref<2x32x1xf32, #tpu.memory_space<vmem>>, %arg5: memref<2x32x9xf32, #tpu.memory_space<vmem>>, %arg6: memref<2x32x1xf32, #tpu.memory_space<vmem>>, %arg7: memref<2x8x32xbf16, #tpu.memory_space<vmem>>, %arg8: memref<2x8x1xf32, #tpu.memory_space<vmem>>, %arg9: memref<1x8x256xf32, #tpu.memory_space<vmem>>) attributes {dimension_semantics = [#tpu.dimension_semantics<parallel>], iteration_bounds = array<i64: 2>, scalar_prefetch = 0 : i64, scratch_operands = 0 : i64, tpu.core_type = #tpu.core_type<tc>, window_params = [{transform_indices = @transform_0, window_bounds = array<i64: 1, 8, 256>}, {pipeline_mode = #tpu.pipeline_mode<synchronous>, transform_indices = @transform_1, window_bounds = array<i64: 4, 256>}, {pipeline_mode = #tpu.pipeline_mode<synchronous>, transform_indices = @transform_2, window_bounds = array<i64: 2, 32, 8>}, {pipeline_mode = #tpu.pipeline_mode<synchronous>, transform_indices = @transform_3, window_bounds = array<i64: 2, 32, 1>}, {pipeline_mode = #tpu.pipeline_mode<synchronous>, transform_indices = @transform_4, window_bounds = array<i64: 2, 32, 9>}, {pipeline_mode = #tpu.pipeline_mode<synchronous>, transform_indices = @transform_5, window_bounds = array<i64: 2, 32, 1>}, {pipeline_mode = #tpu.pipeline_mode<synchronous>, transform_indices = @transform_6, window_bounds = array<i64: 2, 8, 32>}, {pipeline_mode = #tpu.pipeline_mode<synchronous>, transform_indices = @transform_7, window_bounds = array<i64: 2, 8, 1>}, {transform_indices = @transform_8, window_bounds = array<i64: 1, 8, 256>}]} {
    %c0 = arith.constant 0 : index
    %c0_0 = arith.constant 0 : index
    %0 = vector.load %arg2[%c0, %c0_0] : memref<4x256xf32, #tpu.memory_space<vmem>>, vector<1x256xf32>
    %c1 = arith.constant 1 : index
    %c0_1 = arith.constant 0 : index
    %1 = vector.load %arg2[%c1, %c0_1] : memref<4x256xf32, #tpu.memory_space<vmem>>, vector<1x256xf32>
    %c2 = arith.constant 2 : index
    %c0_2 = arith.constant 0 : index
    %2 = vector.load %arg2[%c2, %c0_2] : memref<4x256xf32, #tpu.memory_space<vmem>>, vector<1x256xf32>
    %c3 = arith.constant 3 : index
    %c0_3 = arith.constant 0 : index
    %3 = vector.load %arg2[%c3, %c0_3] : memref<4x256xf32, #tpu.memory_space<vmem>>, vector<1x256xf32>
    %c0_4 = arith.constant 0 : index
    %c0_5 = arith.constant 0 : index
    %c0_6 = arith.constant 0 : index
    %4 = vector.load %arg1[%c0_4, %c0_5, %c0_6] : memref<1x8x256xf32, #tpu.memory_space<vmem>>, vector<1x8x256xf32>
    %5 = vector.shape_cast %4 : vector<1x8x256xf32> to vector<8x256xf32>
    %c0_7 = arith.constant 0 : index
    %c0_8 = arith.constant 0 : index
    %c0_9 = arith.constant 0 : index
    %6 = vector.load %arg3[%c0_7, %c0_8, %c0_9] : memref<2x32x8xbf16, #tpu.memory_space<vmem>>, vector<1x32x8xbf16>
    %7 = vector.shape_cast %6 : vector<1x32x8xbf16> to vector<32x8xbf16>
    %8 = arith.truncf %5 : vector<8x256xf32> to vector<8x256xbf16>
    %cst = arith.constant dense<0.000000e+00> : vector<32x256xf32>
    %9 = tpu.matmul %7, %8, %cst {dimension_numbers = #tpu.dot_dimension_numbers<[1], [0], [0], [1], [0, 0, 1, 1], [], []>} : vector<32x8xbf16>, vector<8x256xbf16>, vector<32x256xf32> -> vector<32x256xf32>
    %c0_10 = arith.constant 0 : index
    %c0_11 = arith.constant 0 : index
    %c0_12 = arith.constant 0 : index
    %10 = vector.load %arg4[%c0_10, %c0_11, %c0_12] : memref<2x32x1xf32, #tpu.memory_space<vmem>>, vector<1x32x1xf32>
    %11 = vector.shape_cast %10 : vector<1x32x1xf32> to vector<32x1xf32>
    %12 = vector.broadcast %11 : vector<32x1xf32> to vector<32x256xf32>
    %13 = arith.addf %9, %12 : vector<32x256xf32>
    %cst_13 = arith.constant 5.000000e-01 : f32
    %14 = vector.broadcast %cst_13 : f32 to vector<32x256xf32>
    %15 = arith.mulf %14, %13 : vector<32x256xf32>
    %cst_14 = arith.constant 4.471500e-02 : f32
    %16 = vector.broadcast %cst_14 : f32 to vector<32x256xf32>
    %17 = arith.mulf %16, %13 : vector<32x256xf32>
    %18 = arith.mulf %17, %13 : vector<32x256xf32>
    %19 = arith.mulf %18, %13 : vector<32x256xf32>
    %20 = arith.addf %13, %19 : vector<32x256xf32>
    %cst_15 = arith.constant 0.797884583 : f32
    %21 = vector.broadcast %cst_15 : f32 to vector<32x256xf32>
    %22 = arith.mulf %21, %20 : vector<32x256xf32>
    %23 = math.tanh %22 : vector<32x256xf32>
    %cst_16 = arith.constant 1.000000e+00 : f32
    %24 = vector.broadcast %cst_16 : f32 to vector<32x256xf32>
    %25 = arith.addf %24, %23 : vector<32x256xf32>
    %26 = arith.mulf %15, %25 : vector<32x256xf32>
    %c0_17 = arith.constant 0 : index
    %c0_18 = arith.constant 0 : index
    %c0_19 = arith.constant 0 : index
    %27 = vector.load %arg5[%c0_17, %c0_18, %c0_19] : memref<2x32x9xf32, #tpu.memory_space<vmem>>, vector<1x32x9xf32>
    %28 = vector.shape_cast %27 : vector<1x32x9xf32> to vector<32x9xf32>
    %c1_i32 = arith.constant 1 : i32
    %29 = tpu.dynamic_rotate %26 by %c1_i32 dim 1 : vector<32x256xf32>, i32 -> vector<32x256xf32>
    %30 = vector.broadcast %0 : vector<1x256xf32> to vector<32x256xf32>
    %31 = arith.mulf %29, %30 : vector<32x256xf32>
    %c255_i32 = arith.constant 255 : i32
    %32 = tpu.dynamic_rotate %26 by %c255_i32 dim 1 : vector<32x256xf32>, i32 -> vector<32x256xf32>
    %33 = vector.broadcast %1 : vector<1x256xf32> to vector<32x256xf32>
    %34 = arith.mulf %32, %33 : vector<32x256xf32>
    %35 = vector.extract_strided_slice %28 {offsets = [0, 0], sizes = [32, 1], strides = [1, 1]} : vector<32x9xf32> to vector<32x1xf32>
    %36 = vector.broadcast %35 : vector<32x1xf32> to vector<32x256xf32>
    %37 = arith.mulf %36, %31 : vector<32x256xf32>
    %38 = vector.extract_strided_slice %28 {offsets = [0, 1], sizes = [32, 1], strides = [1, 1]} : vector<32x9xf32> to vector<32x1xf32>
    %39 = vector.broadcast %38 : vector<32x1xf32> to vector<32x256xf32>
    %40 = arith.mulf %39, %26 : vector<32x256xf32>
    %41 = arith.addf %37, %40 : vector<32x256xf32>
    %42 = vector.extract_strided_slice %28 {offsets = [0, 2], sizes = [32, 1], strides = [1, 1]} : vector<32x9xf32> to vector<32x1xf32>
    %43 = vector.broadcast %42 : vector<32x1xf32> to vector<32x256xf32>
    %44 = arith.mulf %43, %34 : vector<32x256xf32>
    %45 = arith.addf %41, %44 : vector<32x256xf32>
    %c16_i32 = arith.constant 16 : i32
    %46 = tpu.dynamic_rotate %45 by %c16_i32 dim 1 : vector<32x256xf32>, i32 -> vector<32x256xf32>
    %47 = vector.broadcast %2 : vector<1x256xf32> to vector<32x256xf32>
    %48 = arith.mulf %46, %47 : vector<32x256xf32>
    %49 = vector.extract_strided_slice %28 {offsets = [0, 3], sizes = [32, 1], strides = [1, 1]} : vector<32x9xf32> to vector<32x1xf32>
    %50 = vector.broadcast %49 : vector<32x1xf32> to vector<32x256xf32>
    %51 = arith.mulf %50, %31 : vector<32x256xf32>
    %52 = vector.extract_strided_slice %28 {offsets = [0, 4], sizes = [32, 1], strides = [1, 1]} : vector<32x9xf32> to vector<32x1xf32>
    %53 = vector.broadcast %52 : vector<32x1xf32> to vector<32x256xf32>
    %54 = arith.mulf %53, %26 : vector<32x256xf32>
    %55 = arith.addf %51, %54 : vector<32x256xf32>
    %56 = vector.extract_strided_slice %28 {offsets = [0, 5], sizes = [32, 1], strides = [1, 1]} : vector<32x9xf32> to vector<32x1xf32>
    %57 = vector.broadcast %56 : vector<32x1xf32> to vector<32x256xf32>
    %58 = arith.mulf %57, %34 : vector<32x256xf32>
    %59 = arith.addf %55, %58 : vector<32x256xf32>
    %60 = arith.addf %48, %59 : vector<32x256xf32>
    %61 = vector.extract_strided_slice %28 {offsets = [0, 6], sizes = [32, 1], strides = [1, 1]} : vector<32x9xf32> to vector<32x1xf32>
    %62 = vector.broadcast %61 : vector<32x1xf32> to vector<32x256xf32>
    %63 = arith.mulf %62, %31 : vector<32x256xf32>
    %64 = vector.extract_strided_slice %28 {offsets = [0, 7], sizes = [32, 1], strides = [1, 1]} : vector<32x9xf32> to vector<32x1xf32>
    %65 = vector.broadcast %64 : vector<32x1xf32> to vector<32x256xf32>
    %66 = arith.mulf %65, %26 : vector<32x256xf32>
    %67 = arith.addf %63, %66 : vector<32x256xf32>
    %68 = vector.extract_strided_slice %28 {offsets = [0, 8], sizes = [32, 1], strides = [1, 1]} : vector<32x9xf32> to vector<32x1xf32>
    %69 = vector.broadcast %68 : vector<32x1xf32> to vector<32x256xf32>
    %70 = arith.mulf %69, %34 : vector<32x256xf32>
    %71 = arith.addf %67, %70 : vector<32x256xf32>
    %c240_i32 = arith.constant 240 : i32
    %72 = tpu.dynamic_rotate %71 by %c240_i32 dim 1 : vector<32x256xf32>, i32 -> vector<32x256xf32>
    %73 = vector.broadcast %3 : vector<1x256xf32> to vector<32x256xf32>
    %74 = arith.mulf %72, %73 : vector<32x256xf32>
    %75 = arith.addf %60, %74 : vector<32x256xf32>
    %c0_20 = arith.constant 0 : index
    %c0_21 = arith.constant 0 : index
    %c0_22 = arith.constant 0 : index
    %76 = vector.load %arg6[%c0_20, %c0_21, %c0_22] : memref<2x32x1xf32, #tpu.memory_space<vmem>>, vector<1x32x1xf32>
    %77 = vector.shape_cast %76 : vector<1x32x1xf32> to vector<32x1xf32>
    %78 = vector.broadcast %77 : vector<32x1xf32> to vector<32x256xf32>
    %79 = arith.addf %75, %78 : vector<32x256xf32>
    %cst_23 = arith.constant 5.000000e-01 : f32
    %80 = vector.broadcast %cst_23 : f32 to vector<32x256xf32>
    %81 = arith.mulf %80, %79 : vector<32x256xf32>
    %cst_24 = arith.constant 4.471500e-02 : f32
    %82 = vector.broadcast %cst_24 : f32 to vector<32x256xf32>
    %83 = arith.mulf %82, %79 : vector<32x256xf32>
    %84 = arith.mulf %83, %79 : vector<32x256xf32>
    %85 = arith.mulf %84, %79 : vector<32x256xf32>
    %86 = arith.addf %79, %85 : vector<32x256xf32>
    %cst_25 = arith.constant 0.797884583 : f32
    %87 = vector.broadcast %cst_25 : f32 to vector<32x256xf32>
    %88 = arith.mulf %87, %86 : vector<32x256xf32>
    %89 = math.tanh %88 : vector<32x256xf32>
    %cst_26 = arith.constant 1.000000e+00 : f32
    %90 = vector.broadcast %cst_26 : f32 to vector<32x256xf32>
    %91 = arith.addf %90, %89 : vector<32x256xf32>
    %92 = arith.mulf %81, %91 : vector<32x256xf32>
    %c0_27 = arith.constant 0 : index
    %c0_28 = arith.constant 0 : index
    %c0_29 = arith.constant 0 : index
    %93 = vector.load %arg7[%c0_27, %c0_28, %c0_29] : memref<2x8x32xbf16, #tpu.memory_space<vmem>>, vector<1x8x32xbf16>
    %94 = vector.shape_cast %93 : vector<1x8x32xbf16> to vector<8x32xbf16>
    %95 = arith.truncf %92 : vector<32x256xf32> to vector<32x256xbf16>
    %cst_30 = arith.constant dense<0.000000e+00> : vector<8x256xf32>
    %96 = tpu.matmul %94, %95, %cst_30 {dimension_numbers = #tpu.dot_dimension_numbers<[1], [0], [0], [1], [0, 0, 1, 1], [], []>} : vector<8x32xbf16>, vector<32x256xbf16>, vector<8x256xf32> -> vector<8x256xf32>
    %c0_31 = arith.constant 0 : index
    %c0_32 = arith.constant 0 : index
    %c0_33 = arith.constant 0 : index
    %97 = vector.load %arg8[%c0_31, %c0_32, %c0_33] : memref<2x8x1xf32, #tpu.memory_space<vmem>>, vector<1x8x1xf32>
    %98 = vector.shape_cast %97 : vector<1x8x1xf32> to vector<8x1xf32>
    %99 = vector.broadcast %98 : vector<8x1xf32> to vector<8x256xf32>
    %100 = arith.addf %96, %99 : vector<8x256xf32>
    %101 = arith.addf %100, %5 : vector<8x256xf32>
    %cst_34 = arith.constant 5.000000e-01 : f32
    %102 = vector.broadcast %cst_34 : f32 to vector<8x256xf32>
    %103 = arith.mulf %102, %101 : vector<8x256xf32>
    %cst_35 = arith.constant 4.471500e-02 : f32
    %104 = vector.broadcast %cst_35 : f32 to vector<8x256xf32>
    %105 = arith.mulf %104, %101 : vector<8x256xf32>
    %106 = arith.mulf %105, %101 : vector<8x256xf32>
    %107 = arith.mulf %106, %101 : vector<8x256xf32>
    %108 = arith.addf %101, %107 : vector<8x256xf32>
    %cst_36 = arith.constant 0.797884583 : f32
    %109 = vector.broadcast %cst_36 : f32 to vector<8x256xf32>
    %110 = arith.mulf %109, %108 : vector<8x256xf32>
    %111 = math.tanh %110 : vector<8x256xf32>
    %cst_37 = arith.constant 1.000000e+00 : f32
    %112 = vector.broadcast %cst_37 : f32 to vector<8x256xf32>
    %113 = arith.addf %112, %111 : vector<8x256xf32>
    %114 = arith.mulf %103, %113 : vector<8x256xf32>
    %c1_38 = arith.constant 1 : index
    %c0_39 = arith.constant 0 : index
    %c0_40 = arith.constant 0 : index
    %115 = vector.load %arg3[%c1_38, %c0_39, %c0_40] : memref<2x32x8xbf16, #tpu.memory_space<vmem>>, vector<1x32x8xbf16>
    %116 = vector.shape_cast %115 : vector<1x32x8xbf16> to vector<32x8xbf16>
    %117 = arith.truncf %114 : vector<8x256xf32> to vector<8x256xbf16>
    %cst_41 = arith.constant dense<0.000000e+00> : vector<32x256xf32>
    %118 = tpu.matmul %116, %117, %cst_41 {dimension_numbers = #tpu.dot_dimension_numbers<[1], [0], [0], [1], [0, 0, 1, 1], [], []>} : vector<32x8xbf16>, vector<8x256xbf16>, vector<32x256xf32> -> vector<32x256xf32>
    %c1_42 = arith.constant 1 : index
    %c0_43 = arith.constant 0 : index
    %c0_44 = arith.constant 0 : index
    %119 = vector.load %arg4[%c1_42, %c0_43, %c0_44] : memref<2x32x1xf32, #tpu.memory_space<vmem>>, vector<1x32x1xf32>
    %120 = vector.shape_cast %119 : vector<1x32x1xf32> to vector<32x1xf32>
    %121 = vector.broadcast %120 : vector<32x1xf32> to vector<32x256xf32>
    %122 = arith.addf %118, %121 : vector<32x256xf32>
    %cst_45 = arith.constant 5.000000e-01 : f32
    %123 = vector.broadcast %cst_45 : f32 to vector<32x256xf32>
    %124 = arith.mulf %123, %122 : vector<32x256xf32>
    %cst_46 = arith.constant 4.471500e-02 : f32
    %125 = vector.broadcast %cst_46 : f32 to vector<32x256xf32>
    %126 = arith.mulf %125, %122 : vector<32x256xf32>
    %127 = arith.mulf %126, %122 : vector<32x256xf32>
    %128 = arith.mulf %127, %122 : vector<32x256xf32>
    %129 = arith.addf %122, %128 : vector<32x256xf32>
    %cst_47 = arith.constant 0.797884583 : f32
    %130 = vector.broadcast %cst_47 : f32 to vector<32x256xf32>
    %131 = arith.mulf %130, %129 : vector<32x256xf32>
    %132 = math.tanh %131 : vector<32x256xf32>
    %cst_48 = arith.constant 1.000000e+00 : f32
    %133 = vector.broadcast %cst_48 : f32 to vector<32x256xf32>
    %134 = arith.addf %133, %132 : vector<32x256xf32>
    %135 = arith.mulf %124, %134 : vector<32x256xf32>
    %c1_49 = arith.constant 1 : index
    %c0_50 = arith.constant 0 : index
    %c0_51 = arith.constant 0 : index
    %136 = vector.load %arg5[%c1_49, %c0_50, %c0_51] : memref<2x32x9xf32, #tpu.memory_space<vmem>>, vector<1x32x9xf32>
    %137 = vector.shape_cast %136 : vector<1x32x9xf32> to vector<32x9xf32>
    %c1_i32_52 = arith.constant 1 : i32
    %138 = tpu.dynamic_rotate %135 by %c1_i32_52 dim 1 : vector<32x256xf32>, i32 -> vector<32x256xf32>
    %139 = vector.broadcast %0 : vector<1x256xf32> to vector<32x256xf32>
    %140 = arith.mulf %138, %139 : vector<32x256xf32>
    %c255_i32_53 = arith.constant 255 : i32
    %141 = tpu.dynamic_rotate %135 by %c255_i32_53 dim 1 : vector<32x256xf32>, i32 -> vector<32x256xf32>
    %142 = vector.broadcast %1 : vector<1x256xf32> to vector<32x256xf32>
    %143 = arith.mulf %141, %142 : vector<32x256xf32>
    %144 = vector.extract_strided_slice %137 {offsets = [0, 0], sizes = [32, 1], strides = [1, 1]} : vector<32x9xf32> to vector<32x1xf32>
    %145 = vector.broadcast %144 : vector<32x1xf32> to vector<32x256xf32>
    %146 = arith.mulf %145, %140 : vector<32x256xf32>
    %147 = vector.extract_strided_slice %137 {offsets = [0, 1], sizes = [32, 1], strides = [1, 1]} : vector<32x9xf32> to vector<32x1xf32>
    %148 = vector.broadcast %147 : vector<32x1xf32> to vector<32x256xf32>
    %149 = arith.mulf %148, %135 : vector<32x256xf32>
    %150 = arith.addf %146, %149 : vector<32x256xf32>
    %151 = vector.extract_strided_slice %137 {offsets = [0, 2], sizes = [32, 1], strides = [1, 1]} : vector<32x9xf32> to vector<32x1xf32>
    %152 = vector.broadcast %151 : vector<32x1xf32> to vector<32x256xf32>
    %153 = arith.mulf %152, %143 : vector<32x256xf32>
    %154 = arith.addf %150, %153 : vector<32x256xf32>
    %c16_i32_54 = arith.constant 16 : i32
    %155 = tpu.dynamic_rotate %154 by %c16_i32_54 dim 1 : vector<32x256xf32>, i32 -> vector<32x256xf32>
    %156 = vector.broadcast %2 : vector<1x256xf32> to vector<32x256xf32>
    %157 = arith.mulf %155, %156 : vector<32x256xf32>
    %158 = vector.extract_strided_slice %137 {offsets = [0, 3], sizes = [32, 1], strides = [1, 1]} : vector<32x9xf32> to vector<32x1xf32>
    %159 = vector.broadcast %158 : vector<32x1xf32> to vector<32x256xf32>
    %160 = arith.mulf %159, %140 : vector<32x256xf32>
    %161 = vector.extract_strided_slice %137 {offsets = [0, 4], sizes = [32, 1], strides = [1, 1]} : vector<32x9xf32> to vector<32x1xf32>
    %162 = vector.broadcast %161 : vector<32x1xf32> to vector<32x256xf32>
    %163 = arith.mulf %162, %135 : vector<32x256xf32>
    %164 = arith.addf %160, %163 : vector<32x256xf32>
    %165 = vector.extract_strided_slice %137 {offsets = [0, 5], sizes = [32, 1], strides = [1, 1]} : vector<32x9xf32> to vector<32x1xf32>
    %166 = vector.broadcast %165 : vector<32x1xf32> to vector<32x256xf32>
    %167 = arith.mulf %166, %143 : vector<32x256xf32>
    %168 = arith.addf %164, %167 : vector<32x256xf32>
    %169 = arith.addf %157, %168 : vector<32x256xf32>
    %170 = vector.extract_strided_slice %137 {offsets = [0, 6], sizes = [32, 1], strides = [1, 1]} : vector<32x9xf32> to vector<32x1xf32>
    %171 = vector.broadcast %170 : vector<32x1xf32> to vector<32x256xf32>
    %172 = arith.mulf %171, %140 : vector<32x256xf32>
    %173 = vector.extract_strided_slice %137 {offsets = [0, 7], sizes = [32, 1], strides = [1, 1]} : vector<32x9xf32> to vector<32x1xf32>
    %174 = vector.broadcast %173 : vector<32x1xf32> to vector<32x256xf32>
    %175 = arith.mulf %174, %135 : vector<32x256xf32>
    %176 = arith.addf %172, %175 : vector<32x256xf32>
    %177 = vector.extract_strided_slice %137 {offsets = [0, 8], sizes = [32, 1], strides = [1, 1]} : vector<32x9xf32> to vector<32x1xf32>
    %178 = vector.broadcast %177 : vector<32x1xf32> to vector<32x256xf32>
    %179 = arith.mulf %178, %143 : vector<32x256xf32>
    %180 = arith.addf %176, %179 : vector<32x256xf32>
    %c240_i32_55 = arith.constant 240 : i32
    %181 = tpu.dynamic_rotate %180 by %c240_i32_55 dim 1 : vector<32x256xf32>, i32 -> vector<32x256xf32>
    %182 = vector.broadcast %3 : vector<1x256xf32> to vector<32x256xf32>
    %183 = arith.mulf %181, %182 : vector<32x256xf32>
    %184 = arith.addf %169, %183 : vector<32x256xf32>
    %c1_56 = arith.constant 1 : index
    %c0_57 = arith.constant 0 : index
    %c0_58 = arith.constant 0 : index
    %185 = vector.load %arg6[%c1_56, %c0_57, %c0_58] : memref<2x32x1xf32, #tpu.memory_space<vmem>>, vector<1x32x1xf32>
    %186 = vector.shape_cast %185 : vector<1x32x1xf32> to vector<32x1xf32>
    %187 = vector.broadcast %186 : vector<32x1xf32> to vector<32x256xf32>
    %188 = arith.addf %184, %187 : vector<32x256xf32>
    %cst_59 = arith.constant 5.000000e-01 : f32
    %189 = vector.broadcast %cst_59 : f32 to vector<32x256xf32>
    %190 = arith.mulf %189, %188 : vector<32x256xf32>
    %cst_60 = arith.constant 4.471500e-02 : f32
    %191 = vector.broadcast %cst_60 : f32 to vector<32x256xf32>
    %192 = arith.mulf %191, %188 : vector<32x256xf32>
    %193 = arith.mulf %192, %188 : vector<32x256xf32>
    %194 = arith.mulf %193, %188 : vector<32x256xf32>
    %195 = arith.addf %188, %194 : vector<32x256xf32>
    %cst_61 = arith.constant 0.797884583 : f32
    %196 = vector.broadcast %cst_61 : f32 to vector<32x256xf32>
    %197 = arith.mulf %196, %195 : vector<32x256xf32>
    %198 = math.tanh %197 : vector<32x256xf32>
    %cst_62 = arith.constant 1.000000e+00 : f32
    %199 = vector.broadcast %cst_62 : f32 to vector<32x256xf32>
    %200 = arith.addf %199, %198 : vector<32x256xf32>
    %201 = arith.mulf %190, %200 : vector<32x256xf32>
    %c1_63 = arith.constant 1 : index
    %c0_64 = arith.constant 0 : index
    %c0_65 = arith.constant 0 : index
    %202 = vector.load %arg7[%c1_63, %c0_64, %c0_65] : memref<2x8x32xbf16, #tpu.memory_space<vmem>>, vector<1x8x32xbf16>
    %203 = vector.shape_cast %202 : vector<1x8x32xbf16> to vector<8x32xbf16>
    %204 = arith.truncf %201 : vector<32x256xf32> to vector<32x256xbf16>
    %cst_66 = arith.constant dense<0.000000e+00> : vector<8x256xf32>
    %205 = tpu.matmul %203, %204, %cst_66 {dimension_numbers = #tpu.dot_dimension_numbers<[1], [0], [0], [1], [0, 0, 1, 1], [], []>} : vector<8x32xbf16>, vector<32x256xbf16>, vector<8x256xf32> -> vector<8x256xf32>
    %c1_67 = arith.constant 1 : index
    %c0_68 = arith.constant 0 : index
    %c0_69 = arith.constant 0 : index
    %206 = vector.load %arg8[%c1_67, %c0_68, %c0_69] : memref<2x8x1xf32, #tpu.memory_space<vmem>>, vector<1x8x1xf32>
    %207 = vector.shape_cast %206 : vector<1x8x1xf32> to vector<8x1xf32>
    %208 = vector.broadcast %207 : vector<8x1xf32> to vector<8x256xf32>
    %209 = arith.addf %205, %208 : vector<8x256xf32>
    %210 = arith.addf %209, %114 : vector<8x256xf32>
    %cst_70 = arith.constant 5.000000e-01 : f32
    %211 = vector.broadcast %cst_70 : f32 to vector<8x256xf32>
    %212 = arith.mulf %211, %210 : vector<8x256xf32>
    %cst_71 = arith.constant 4.471500e-02 : f32
    %213 = vector.broadcast %cst_71 : f32 to vector<8x256xf32>
    %214 = arith.mulf %213, %210 : vector<8x256xf32>
    %215 = arith.mulf %214, %210 : vector<8x256xf32>
    %216 = arith.mulf %215, %210 : vector<8x256xf32>
    %217 = arith.addf %210, %216 : vector<8x256xf32>
    %cst_72 = arith.constant 0.797884583 : f32
    %218 = vector.broadcast %cst_72 : f32 to vector<8x256xf32>
    %219 = arith.mulf %218, %217 : vector<8x256xf32>
    %220 = math.tanh %219 : vector<8x256xf32>
    %cst_73 = arith.constant 1.000000e+00 : f32
    %221 = vector.broadcast %cst_73 : f32 to vector<8x256xf32>
    %222 = arith.addf %221, %220 : vector<8x256xf32>
    %223 = arith.mulf %212, %222 : vector<8x256xf32>
    %c0_74 = arith.constant 0 : index
    %c0_75 = arith.constant 0 : index
    %c0_76 = arith.constant 0 : index
    %224 = vector.load %arg9[%c0_74, %c0_75, %c0_76] : memref<1x8x256xf32, #tpu.memory_space<vmem>>, vector<1x8x256xf32>
    %225 = vector.shape_cast %224 : vector<1x8x256xf32> to vector<8x256xf32>
    %226 = vector.shape_cast %223 : vector<8x256xf32> to vector<1x8x256xf32>
    tpu.vector_store %arg9[%c0_74, %c0_75, %c0_76], %226 {strides = array<i32>} : memref<1x8x256xf32, #tpu.memory_space<vmem>>, vector<1x8x256xf32>,
    return
  }
  func.func @transform_0(%arg0: i32) -> (i32, i32, i32) {
    %c0_i32 = arith.constant 0 : i32
    %c0_i32_0 = arith.constant 0 : i32
    %c0_i32_1 = arith.constant 0 : i32
    return %arg0, %c0_i32, %c0_i32_0 : i32, i32, i32
  }
  func.func @transform_1(%arg0: i32) -> (i32, i32) {
    %c0_i32 = arith.constant 0 : i32
    %c0_i32_0 = arith.constant 0 : i32
    %c0_i32_1 = arith.constant 0 : i32
    return %c0_i32, %c0_i32_0 : i32, i32
  }
  func.func @transform_2(%arg0: i32) -> (i32, i32, i32) {
    %c0_i32 = arith.constant 0 : i32
    %c0_i32_0 = arith.constant 0 : i32
    %c0_i32_1 = arith.constant 0 : i32
    %c0_i32_2 = arith.constant 0 : i32
    return %c0_i32, %c0_i32_0, %c0_i32_1 : i32, i32, i32
  }
  func.func @transform_3(%arg0: i32) -> (i32, i32, i32) {
    %c0_i32 = arith.constant 0 : i32
    %c0_i32_0 = arith.constant 0 : i32
    %c0_i32_1 = arith.constant 0 : i32
    %c0_i32_2 = arith.constant 0 : i32
    return %c0_i32, %c0_i32_0, %c0_i32_1 : i32, i32, i32
  }
  func.func @transform_4(%arg0: i32) -> (i32, i32, i32) {
    %c0_i32 = arith.constant 0 : i32
    %c0_i32_0 = arith.constant 0 : i32
    %c0_i32_1 = arith.constant 0 : i32
    %c0_i32_2 = arith.constant 0 : i32
    return %c0_i32, %c0_i32_0, %c0_i32_1 : i32, i32, i32
  }
  func.func @transform_5(%arg0: i32) -> (i32, i32, i32) {
    %c0_i32 = arith.constant 0 : i32
    %c0_i32_0 = arith.constant 0 : i32
    %c0_i32_1 = arith.constant 0 : i32
    %c0_i32_2 = arith.constant 0 : i32
    return %c0_i32, %c0_i32_0, %c0_i32_1 : i32, i32, i32
  }
  func.func @transform_6(%arg0: i32) -> (i32, i32, i32) {
    %c0_i32 = arith.constant 0 : i32
    %c0_i32_0 = arith.constant 0 : i32
    %c0_i32_1 = arith.constant 0 : i32
    %c0_i32_2 = arith.constant 0 : i32
    return %c0_i32, %c0_i32_0, %c0_i32_1 : i32, i32, i32
  }
  func.func @transform_7(%arg0: i32) -> (i32, i32, i32) {
    %c0_i32 = arith.constant 0 : i32
    %c0_i32_0 = arith.constant 0 : i32
    %c0_i32_1 = arith.constant 0 : i32
    %c0_i32_2 = arith.constant 0 : i32
    return %c0_i32, %c0_i32_0, %c0_i32_1 : i32, i32, i32
  }
  func.func @transform_8(%arg0: i32) -> (i32, i32, i32) {
    %c0_i32 = arith.constant 0 : i32
    %c0_i32_0 = arith.constant 0 : i32
    %c0_i32_1 = arith.constant 0 : i32
    return %arg0, %c0_i32, %c0_i32_0 : i32, i32, i32
  }
}

</mosaic_0001>

<llo_original>
// kernel: tpu_custom_call.1
$region0: #{tpu_custom_call.1}
  #allocation0 [shape = 'u32[]', space=smem, size = 0x4, offset = 0x4, fixed_abs, tag = 'smem constant byte address 0x4 - core index']
  #allocation1 [shape = 'u32[144,128]{1,0:T(1,128)}', space=vmem, size = 0x12000, scoped, tag = 'internal scratch']
  %s0 = inlined_call_operand.vmem [shape: f32[2,8,256], index: 0, kind: input, shape index: {}]
  %s1 = inlined_call_operand.vmem [shape: f32[4,256], index: 1, kind: input, shape index: {}]
  %s2 = inlined_call_operand.vmem [shape: bf16[2,32,8], index: 2, kind: input, shape index: {}]
  %s3 = inlined_call_operand.vmem [shape: f32[2,32,1], index: 3, kind: input, shape index: {}]
  %s4 = inlined_call_operand.vmem [shape: f32[2,32,9], index: 4, kind: input, shape index: {}]
  %s5 = inlined_call_operand.vmem [shape: f32[2,32,1], index: 5, kind: input, shape index: {}]
  %s6 = inlined_call_operand.vmem [shape: bf16[2,8,32], index: 6, kind: input, shape index: {}]
  %s7 = inlined_call_operand.vmem [shape: f32[2,8,1], index: 7, kind: input, shape index: {}]
  %s8 = inlined_call_operand.hbm [shape: f32[2,8,256], index: 8, kind: output, shape index: {}]
  %s9 = sld [smem:[#allocation0]]
  $region65: #{tpu_custom_call.1} parent=0
    _
  %s11 = ssub.s32 1, %s9
  %s12 = scalar_select 0, %s11, %s9
  $region1: #{tpu_custom_call.1} parent=0
    #allocation2 [shape = 'u8[16384]{0}', space=vmem, size = 0x4000, scoped, tag = 'output window, operand 0']
    #allocation3 [shape = 's32[2]{0}', space=sflag, size = 0x8, scoped, tag = 'scoped memory for tpu_custom_call.1']
    %13 = vsyncpa [#allocation3], 0
    %s14 = scalar_lea.sflag [#allocation3], 1
    %15 = vsyncpa %s14, 0
    loop: start=0, step=1, limit=4
    $region2: #{tpu_custom_call.1} parent=1 // loop_pre_header
      _
    $region3: #{tpu_custom_call.1} parent=1 // loop_header
      %s17 = sphi 0, %s21
      %p18 = scmp.ge.s32.totalorder %s17, 4
      %s27 = sphi 0, %s29
      %s30 = sphi 0, %s27
      %s31 = sphi 0, %s30
      %s47 = sphi 0, %s31
      %s51 = sphi 0, %s51
      %s53 = sphi 0, %s51
      %s54 = sphi 0, %s53
      %s68 = sphi 0, %s54
      %s72 = sphi 0, %s72
      %s74 = sphi 0, %s72
      %s75 = sphi 0, %s74
      %s89 = sphi 0, %s75
      %s93 = sphi 0, %s93
      %s95 = sphi 0, %s93
      %s96 = sphi 0, %s95
      %s110 = sphi 0, %s96
      %s114 = sphi 0, %s114
      %s116 = sphi 0, %s114
      %s117 = sphi 0, %s116
      %s131 = sphi 0, %s117
      %s135 = sphi 0, %s135
      %s137 = sphi 0, %s135
      %s138 = sphi 0, %s137
      %s152 = sphi 0, %s138
      %s156 = sphi 0, %s156
      %s158 = sphi 0, %s156
      %s159 = sphi 0, %s158
      %s173 = sphi 0, %s159
      %s177 = sphi 0, %s177
      %s179 = sphi 0, %s177
      %s180 = sphi 0, %s179
      %s194 = sphi 0, %s180
      %s200 = sphi 0, %s202
      %s203 = sphi 0, %s200
      %s204 = sphi 0, %s203
      %s220 = sphi 0, %s204
    $region4: #{tpu_custom_call.1} parent=1 // loop_header_branch
      %20 = sbr.rel (%p18) target = $region8
    $region5: #{tpu_custom_call.1} parent=1 // loop_body
      %s22 = ssub.s32 %s17, 1
      %s23 = ssub.s32 %s17, 2
      %s24 = sadd.s32 %s17, 1
      %s25 = ssub.s32 %s17, %s24
      %p26 = scmp.eq.s32.totalorder %s25, 0
      %s28 = sadd.s32 %s27, 1
      %s29 = scalar_select %p26, %s27, %s28
      %p32 = pneg %p26
      %p33 = scmp.eq.s32.totalorder %s17, 1
      %p34 = por %p32, %p33
      %p35 = scmp.ne.s32.totalorder %s27, %s30
      %p36 = scmp.eq.s32.totalorder %s17, 0
      %p37 = por %p35, %p36
      %p38 = scmp.ne.s32.totalorder %s27, %s30
      %p39 = scmp.eq.s32.totalorder %s22, 1
      %p40 = por %p38, %p39
      %p41 = scmp.ne.s32.totalorder %s30, %s31
      %p42 = scmp.eq.s32.totalorder %s22, 0
      %p43 = por %p41, %p42
      %p44 = scmp.ne.s32.totalorder %s30, %s31
      %p45 = scmp.eq.s32.totalorder %s23, 1
      %p46 = por %p44, %p45
      %p48 = scmp.ne.s32.totalorder %s31, %s47
      %p49 = scmp.eq.s32.totalorder %s23, 0
      %p50 = por %p48, %p49
      %s52 = sadd.s32 %s51, 1
      %p55 = scmp.eq.s32.totalorder %s17, 1
      %p56 = scmp.ne.s32.totalorder %s51, %s53
      %p57 = scmp.eq.s32.totalorder %s17, 0
      %p58 = por %p56, %p57
      %p59 = scmp.ne.s32.totalorder %s51, %s53
      %p60 = scmp.eq.s32.totalorder %s22, 1
      %p61 = por %p59, %p60
      %p62 = scmp.ne.s32.totalorder %s53, %s54
      %p63 = scmp.eq.s32.totalorder %s22, 0
      %p64 = por %p62, %p63
      %p65 = scmp.ne.s32.totalorder %s53, %s54
      %p66 = scmp.eq.s32.totalorder %s23, 1
      %p67 = por %p65, %p66
      %p69 = scmp.ne.s32.totalorder %s54, %s68
      %p70 = scmp.eq.s32.totalorder %s23, 0
      %p71 = por %p69, %p70
      %s73 = sadd.s32 %s72, 1
      %p76 = scmp.eq.s32.totalorder %s17, 1
      %p77 = scmp.ne.s32.totalorder %s72, %s74
      %p78 = scmp.eq.s32.totalorder %s17, 0
      %p79 = por %p77, %p78
      %p80 = scmp.ne.s32.totalorder %s72, %s74
      %p81 = scmp.eq.s32.totalorder %s22, 1
      %p82 = por %p80, %p81
      %p83 = scmp.ne.s32.totalorder %s74, %s75
      %p84 = scmp.eq.s32.totalorder %s22, 0
      %p85 = por %p83, %p84
      %p86 = scmp.ne.s32.totalorder %s74, %s75
      %p87 = scmp.eq.s32.totalorder %s23, 1
      %p88 = por %p86, %p87
      %p90 = scmp.ne.s32.totalorder %s75, %s89
      %p91 = scmp.eq.s32.totalorder %s23, 0
      %p92 = por %p90, %p91
      %s94 = sadd.s32 %s93, 1
      %p97 = scmp.eq.s32.totalorder %s17, 1
      %p98 = scmp.ne.s32.totalorder %s93, %s95
      %p99 = scmp.eq.s32.totalorder %s17, 0
      %p100 = por %p98, %p99
      %p101 = scmp.ne.s32.totalorder %s93, %s95
      %p102 = scmp.eq.s32.totalorder %s22, 1
      %p103 = por %p101, %p102
      %p104 = scmp.ne.s32.totalorder %s95, %s96
      %p105 = scmp.eq.s32.totalorder %s22, 0
      %p106 = por %p104, %p105
      %p107 = scmp.ne.s32.totalorder %s95, %s96
      %p108 = scmp.eq.s32.totalorder %s23, 1
      %p109 = por %p107, %p108
      %p111 = scmp.ne.s32.totalorder %s96, %s110
      %p112 = scmp.eq.s32.totalorder %s23, 0
      %p113 = por %p111, %p112
      %s115 = sadd.s32 %s114, 1
      %p118 = scmp.eq.s32.totalorder %s17, 1
      %p119 = scmp.ne.s32.totalorder %s114, %s116
      %p120 = scmp.eq.s32.totalorder %s17, 0
      %p121 = por %p119, %p120
      %p122 = scmp.ne.s32.totalorder %s114, %s116
      %p123 = scmp.eq.s32.totalorder %s22, 1
      %p124 = por %p122, %p123
      %p125 = scmp.ne.s32.totalorder %s116, %s117
      %p126 = scmp.eq.s32.totalorder %s22, 0
      %p127 = por %p125, %p126
      %p128 = scmp.ne.s32.totalorder %s116, %s117
      %p129 = scmp.eq.s32.totalorder %s23, 1
      %p130 = por %p128, %p129
      %p132 = scmp.ne.s32.totalorder %s117, %s131
      %p133 = scmp.eq.s32.totalorder %s23, 0
      %p134 = por %p132, %p133
      %s136 = sadd.s32 %s135, 1
      %p139 = scmp.eq.s32.totalorder %s17, 1
      %p140 = scmp.ne.s32.totalorder %s135, %s137
      %p141 = scmp.eq.s32.totalorder %s17, 0
      %p142 = por %p140, %p141
      %p143 = scmp.ne.s32.totalorder %s135, %s137
      %p144 = scmp.eq.s32.totalorder %s22, 1
      %p145 = por %p143, %p144
      %p146 = scmp.ne.s32.totalorder %s137, %s138
      %p147 = scmp.eq.s32.totalorder %s22, 0
      %p148 = por %p146, %p147
      %p149 = scmp.ne.s32.totalorder %s137, %s138
      %p150 = scmp.eq.s32.totalorder %s23, 1
      %p151 = por %p149, %p150
      %p153 = scmp.ne.s32.totalorder %s138, %s152
      %p154 = scmp.eq.s32.totalorder %s23, 0
      %p155 = por %p153, %p154
      %s157 = sadd.s32 %s156, 1
      %p160 = scmp.eq.s32.totalorder %s17, 1
      %p161 = scmp.ne.s32.totalorder %s156, %s158
      %p162 = scmp.eq.s32.totalorder %s17, 0
      %p163 = por %p161, %p162
      %p164 = scmp.ne.s32.totalorder %s156, %s158
      %p165 = scmp.eq.s32.totalorder %s22, 1
      %p166 = por %p164, %p165
      %p167 = scmp.ne.s32.totalorder %s158, %s159
      %p168 = scmp.eq.s32.totalorder %s22, 0
      %p169 = por %p167, %p168
      %p170 = scmp.ne.s32.totalorder %s158, %s159
      %p171 = scmp.eq.s32.totalorder %s23, 1
      %p172 = por %p170, %p171
      %p174 = scmp.ne.s32.totalorder %s159, %s173
      %p175 = scmp.eq.s32.totalorder %s23, 0
      %p176 = por %p174, %p175
      %s178 = sadd.s32 %s177, 1
      %p181 = scmp.eq.s32.totalorder %s17, 1
      %p182 = scmp.ne.s32.totalorder %s177, %s179
      %p183 = scmp.eq.s32.totalorder %s17, 0
      %p184 = por %p182, %p183
      %p185 = scmp.ne.s32.totalorder %s177, %s179
      %p186 = scmp.eq.s32.totalorder %s22, 1
      %p187 = por %p185, %p186
      %p188 = scmp.ne.s32.totalorder %s179, %s180
      %p189 = scmp.eq.s32.totalorder %s22, 0
      %p190 = por %p188, %p189
      %p191 = scmp.ne.s32.totalorder %s179, %s180
      %p192 = scmp.eq.s32.totalorder %s23, 1
      %p193 = por %p191, %p192
      %p195 = scmp.ne.s32.totalorder %s180, %s194
      %p196 = scmp.eq.s32.totalorder %s23, 0
      %p197 = por %p195, %p196
      %s198 = ssub.s32 %s17, %s24
      %p199 = scmp.eq.s32.totalorder %s198, 0
      %s201 = sadd.s32 %s200, 1
      %s202 = scalar_select %p199, %s200, %s201
      %p205 = pneg %p199
      %p206 = scmp.eq.s32.totalorder %s17, 1
      %p207 = por %p205, %p206
      %p208 = scmp.ne.s32.totalorder %s200, %s203
      %p209 = scmp.eq.s32.totalorder %s17, 0
      %p210 = por %p208, %p209
      %p211 = scmp.ne.s32.totalorder %s200, %s203
      %p212 = scmp.eq.s32.totalorder %s22, 1
      %p213 = por %p211, %p212
      %p214 = scmp.ne.s32.totalorder %s203, %s204
      %p215 = scmp.eq.s32.totalorder %s22, 0
      %p216 = por %p214, %p215
      %p217 = scmp.ne.s32.totalorder %s203, %s204
      %p218 = scmp.eq.s32.totalorder %s23, 1
      %p219 = por %p217, %p218
      %p221 = scmp.ne.s32.totalorder %s204, %s220
      %p222 = scmp.eq.s32.totalorder %s23, 0
      %p223 = por %p221, %p222
      %p224 = scmp.le.s32.totalorder 1, %s17
      %p225 = scmp.lt.s32.totalorder %s17, 3
      %p226 = pnand %p224, %p225
      %p227 = pneg %p226
      // Predicated region
      $region9: #{tpu_custom_call.1} parent=5 // pred_check
        _
      $region10: #{tpu_custom_call.1} parent=5 // pred_check_branch
        %229 = sbr.rel (%p226) target = $region12
      $region11: #{tpu_custom_call.1} parent=5 // pred_region
        %s230 = ssub.s32 %s17, 1
        // Predicated region
        $region13: #{tpu_custom_call.1} parent=11 // pred_check
          %p231 = pneg %p64
        $region14: #{tpu_custom_call.1} parent=11 // pred_check_branch
          %233 = sbr.rel (%p231) target = $region16
        $region15: #{tpu_custom_call.1} parent=11 // pred_region
          _
        $region16: #{tpu_custom_call.1} parent=11 // pred_fallthru
          _
        // Predicated region
        $region17: #{tpu_custom_call.1} parent=11 // pred_check
          %p234 = pneg %p85
        $region18: #{tpu_custom_call.1} parent=11 // pred_check_branch
          %236 = sbr.rel (%p234) target = $region20
        $region19: #{tpu_custom_call.1} parent=11 // pred_region
          _
        $region20: #{tpu_custom_call.1} parent=11 // pred_fallthru
          _
        // Predicated region
        $region21: #{tpu_custom_call.1} parent=11 // pred_check
          %p237 = pneg %p106
        $region22: #{tpu_custom_call.1} parent=11 // pred_check_branch
          %239 = sbr.rel (%p237) target = $region24
        $region23: #{tpu_custom_call.1} parent=11 // pred_region
          _
        $region24: #{tpu_custom_call.1} parent=11 // pred_fallthru
          _
        // Predicated region
        $region25: #{tpu_custom_call.1} parent=11 // pred_check
          %p240 = pneg %p127
        $region26: #{tpu_custom_call.1} parent=11 // pred_check_branch
          %242 = sbr.rel (%p240) target = $region28
        $region27: #{tpu_custom_call.1} parent=11 // pred_region
          _
        $region28: #{tpu_custom_call.1} parent=11 // pred_fallthru
          _
        // Predicated region
        $region29: #{tpu_custom_call.1} parent=11 // pred_check
          %p243 = pneg %p148
        $region30: #{tpu_custom_call.1} parent=11 // pred_check_branch
          %245 = sbr.rel (%p243) target = $region32
        $region31: #{tpu_custom_call.1} parent=11 // pred_region
          _
        $region32: #{tpu_custom_call.1} parent=11 // pred_fallthru
          _
        // Predicated region
        $region33: #{tpu_custom_call.1} parent=11 // pred_check
          %p246 = pneg %p169
        $region34: #{tpu_custom_call.1} parent=11 // pred_check_branch
          %248 = sbr.rel (%p246) target = $region36
        $region35: #{tpu_custom_call.1} parent=11 // pred_region
          _
        $region36: #{tpu_custom_call.1} parent=11 // pred_fallthru
          _
        // Predicated region
        $region37: #{tpu_custom_call.1} parent=11 // pred_check
          %p249 = pneg %p190
        $region38: #{tpu_custom_call.1} parent=11 // pred_check_branch
          %251 = sbr.rel (%p249) target = $region40
        $region39: #{tpu_custom_call.1} parent=11 // pred_region
          _
        $region40: #{tpu_custom_call.1} parent=11 // pred_fallthru
          _
      $region12: #{tpu_custom_call.1} parent=5 // pred_fallthru
        _
      %p252 = scmp.lt.s32.totalorder %s17, 2
      // Predicated region
      $region41: #{tpu_custom_call.1} parent=5 // pred_check
        %p253 = pneg %p252
      $region42: #{tpu_custom_call.1} parent=5 // pred_check_branch
        %255 = sbr.rel (%p253) target = $region44
      $region43: #{tpu_custom_call.1} parent=5 // pred_region
        // Predicated region
        $region45: #{tpu_custom_call.1} parent=43 // pred_check
          %p256 = pneg %p37
        $region46: #{tpu_custom_call.1} parent=43 // pred_check_branch
          %258 = sbr.rel (%p256) target = $region48
        $region47: #{tpu_custom_call.1} parent=43 // pred_region
          %p259 = scmp.lt.s32.totalorder %s17, 1
          %s260 = scalar_select %p259, %s17, 1
          %s261 = smul.addr %s260, 2
          %s262 = smul.addr %s261, 8
          %s263 = scalar_lea.vmem %s0, %s262
        $region48: #{tpu_custom_call.1} parent=43 // pred_fallthru
          _
      $region44: #{tpu_custom_call.1} parent=5 // pred_fallthru
        _
      %p264 = scmp.le.s32.totalorder 1, %s17
      %p265 = scmp.lt.s32.totalorder %s17, 3
      %p266 = pnand %p264, %p265
      %p267 = pneg %p266
      // Predicated region
      $region49: #{tpu_custom_call.1} parent=5 // pred_check
        _
      $region50: #{tpu_custom_call.1} parent=5 // pred_check_branch
        %269 = sbr.rel (%p266) target = $region52
      $region51: #{tpu_custom_call.1} parent=5 // pred_region
        %s270 = ssub.s32 %s17, 1
        %p271 = scmp.lt.s32.totalorder %s22, 1
        %s272 = scalar_select %p271, %s22, 1
        %s273 = smul.addr %s272, 2
        %s274 = smul.addr %s273, 8
        %s275 = scalar_lea.vmem %s0, %s274
        %p276 = pneg %p43
        %p277 = pneg %p40
        %p278 = pneg %p64
        %p279 = pneg %p61
        %p280 = pneg %p85
        %p281 = pneg %p82
        %p282 = pneg %p106
        %p283 = pneg %p103
        %p284 = pneg %p127
        %p285 = pneg %p124
        %p286 = pneg %p148
        %p287 = pneg %p145
        %p288 = pneg %p169
        %p289 = pneg %p166
        %p290 = pneg %p190
        %p291 = pneg %p187
        %p292 = pneg %p216
        %p293 = pneg %p213
        %s294 = sand.u32 %s203, 1
        %s295 = scalar_lea.sflag [#allocation3], %s294
        %s296 = sand.u32 %s203, 1
        %s297 = smul.addr %s296, 16
        %s298 = scalar_lea.vmem [#allocation2], %s297
        %p299 = scmp.lt.s32.totalorder %s22, 1
        %s300 = scalar_select %p299, %s22, 1
        %s301 = smul.addr %s300, 2
        %s302 = smul.addr %s301, 8
        %s303 = scalar_lea.vmem %s0, %s302
        %v305 = vld [vmem:[%s1] ss:$4 sm:$0x3]
        %s306 = scalar_lea.vmem %s1, 1
        %v307 = vld [vmem:[%s306] ss:$4 sm:$0x3]
        %s308 = scalar_lea.vmem %s1, 2
        %v309 = vld [vmem:[%s308] ss:$4 sm:$0x3]
        %s310 = scalar_lea.vmem %s1, 3
        %v311 = vld [vmem:[%s310] ss:$4 sm:$0x3]
        %v312 = vld [vmem:[%s303] sm:$0xff]
        %v313 = vld [vmem:[%s303 + $0x8] sm:$0xff]
        %v314 = vld [vmem:[%s2] sm:$0xf]
        %v315 = vld [vmem:[%s2 + $0x4] sm:$0xf]
        %v316 = vld [vmem:[%s2 + $0x8] sm:$0xf]
        %v317 = vld [vmem:[%s2 + $0xc] sm:$0xf]
        %v318 = vpack.c.bf16 %v312, %v312
        %v319 = vpack.c.bf16 %v313, %v313
        %v320 = vld [vmem:[%s3] sm:$0xff]
        %v321 = vld [vmem:[%s3 + $0x8] sm:$0xff]
        %v322 = vld [vmem:[%s3 + $0x10] sm:$0xff]
        %v323 = vld [vmem:[%s3 + $0x18] sm:$0xff]
        %325 = vset.pattern.permute.xlu0 0
        %326 = vperm.xlu0 %325, %v320
        %v327 = vpop.permute.xlu0 %326
        %330 = vset.pattern.permute.xlu0 0
        %331 = vperm.xlu0 %330, %v321
        %v332 = vpop.permute.xlu0 %331
        %335 = vset.pattern.permute.xlu0 0
        %336 = vperm.xlu0 %335, %v322
        %v337 = vpop.permute.xlu0 %336
        %340 = vset.pattern.permute.xlu0 0
        %341 = vperm.xlu0 %340, %v323
        %v342 = vpop.permute.xlu0 %341
        %v348 = vunpack.c.l.b16 %v314
        %v349 = vunpack.c.l.b16 %v315
        %v350 = vunpack.c.l.b16 %v316
        %v351 = vunpack.c.l.b16 %v317
        %v352 = vpack.c.b16 %v349, %v348
        %v353 = vpack.c.b16 %v351, %v350
        %vm354 = vcmask 64512
        %v356 = vsel %vm354, %v352, 0
        %v359 = vsel %vm354, %v353, 0
        %vm361 = vcmask 1043456
        %v363 = vsel %vm361, %v318, 0
        %v366 = vsel %vm361, %v319, 0
        %368 = vmatprep.subr.bf16.mxu0 %v366
        %369 = vmatpush1.bf16.msra.mxu0 %v363
        %370 = vmatprep.subr.bf16.mxu0 0
        %371 = vmatpush1.bf16.msra.mxu0 0
        %372 = vmatprep.subr.bf16.mxu0 0
        %373 = vmatpush1.bf16.msra.mxu0 0
        %374 = vmatprep.subr.bf16.mxu0 0
        %375 = vmatpush1.bf16.msra.mxu0 0
        %376 = vmatprep.subr.bf16.mxu0 0
        %377 = vmatpush1.bf16.msra.mxu0 0
        %378 = vmatprep.subr.bf16.mxu0 0
        %379 = vmatpush1.bf16.msra.mxu0 0
        %380 = vmatprep.subr.bf16.mxu0 0
        %381 = vmatpush1.bf16.msra.mxu0 0
        %382 = vmatprep.subr.bf16.mxu0 0
        %383 = vmatpush1.bf16.msra.mxu0 0
        %384 = vmatprep.subr.bf16.mxu0 0
        %385 = vmatpush1.bf16.msra.mxu0 0
        %386 = vmatprep.subr.bf16.mxu0 0
        %387 = vmatpush1.bf16.msra.mxu0 0
        %388 = vmatprep.subr.bf16.mxu0 0
        %389 = vmatpush1.bf16.msra.mxu0 0
        %390 = vmatprep.subr.bf16.mxu0 0
        %391 = vmatpush1.bf16.msra.mxu0 0
        %392 = vmatprep.subr.bf16.mxu0 0
        %393 = vmatpush1.bf16.msra.mxu0 0
        %394 = vmatprep.subr.bf16.mxu0 0
        %395 = vmatpush1.bf16.msra.mxu0 0
        %396 = vmatprep.subr.bf16.mxu0 0
        %397 = vmatpush1.bf16.msra.mxu0 0
        %398 = vmatprep.subr.bf16.mxu0 0
        %399 = vmatpush1.bf16.msra.mxu0 0
        %400 = vmatprep.mubr.bf16.mxu0 0
        %401 = vmatmul.mubr.bf16.gmra.mrb[0].mxu0 %v356
        %v402 = vpop.f32.mrb[0].mxu0
        %v403 = vadd.f32 %v327, %v402
        %v404 = vpop.f32.mrb[0].mxu0
        %v405 = vadd.f32 %v327, %v404
        %v406 = vpop.f32.mrb[0].mxu0
        %v407 = vadd.f32 %v332, %v406
        %v408 = vpop.f32.mrb[0].mxu0
        %v409 = vadd.f32 %v332, %v408
        %410 = vmatprep.mubr.bf16.mxu0 0
        %411 = vmatmul.mubr.bf16.gmra.mrb[0].mxu0 %v359
        %v412 = vpop.f32.mrb[0].mxu0
        %v413 = vadd.f32 %v337, %v412
        %v414 = vpop.f32.mrb[0].mxu0
        %v415 = vadd.f32 %v337, %v414
        %v416 = vpop.f32.mrb[0].mxu0
        %v417 = vadd.f32 %v342, %v416
        %v418 = vpop.f32.mrb[0].mxu0
        %v419 = vadd.f32 %v342, %v418
        %420 = vdwg.mxu0
        %v421 = vmul.f32 %v403, 0.5
        %v422 = vmul.f32 %v405, 0.5
        %v423 = vmul.f32 %v407, 0.5
        %v424 = vmul.f32 %v409, 0.5
        %v425 = vmul.f32 %v413, 0.5
        %v426 = vmul.f32 %v415, 0.5
        %v427 = vmul.f32 %v417, 0.5
        %v428 = vmul.f32 %v419, 0.5
        %v429 = vmul.f32 %v403, 0.044715
        %v430 = vmul.f32 %v405, 0.044715
        %v431 = vmul.f32 %v407, 0.044715
        %v432 = vmul.f32 %v409, 0.044715
        %v433 = vmul.f32 %v413, 0.044715
        %v434 = vmul.f32 %v415, 0.044715
        %v435 = vmul.f32 %v417, 0.044715
        %v436 = vmul.f32 %v419, 0.044715
        %v437 = vmul.f32 %v429, %v403
        %v438 = vmul.f32 %v430, %v405
        %v439 = vmul.f32 %v431, %v407
        %v440 = vmul.f32 %v432, %v409
        %v441 = vmul.f32 %v433, %v413
        %v442 = vmul.f32 %v434, %v415
        %v443 = vmul.f32 %v435, %v417
        %v444 = vmul.f32 %v436, %v419
        %v445 = vmul.f32 %v437, %v403
        %v446 = vmul.f32 %v438, %v405
        %v447 = vmul.f32 %v439, %v407
        %v448 = vmul.f32 %v440, %v409
        %v449 = vmul.f32 %v441, %v413
        %v450 = vmul.f32 %v442, %v415
        %v451 = vmul.f32 %v443, %v417
        %v452 = vmul.f32 %v444, %v419
        %v453 = vadd.f32 %v403, %v445
        %v454 = vadd.f32 %v405, %v446
        %v455 = vadd.f32 %v407, %v447
        %v456 = vadd.f32 %v409, %v448
        %v457 = vadd.f32 %v413, %v449
        %v458 = vadd.f32 %v415, %v450
        %v459 = vadd.f32 %v417, %v451
        %v460 = vadd.f32 %v419, %v452
        %v461 = vmul.f32 %v453, 0.7978846
        %v462 = vmul.f32 %v454, 0.7978846
        %v463 = vmul.f32 %v455, 0.7978846
        %v464 = vmul.f32 %v456, 0.7978846
        %v465 = vmul.f32 %v457, 0.7978846
        %v466 = vmul.f32 %v458, 0.7978846
        %v467 = vmul.f32 %v459, 0.7978846
        %v468 = vmul.f32 %v460, 0.7978846
        %v469 = vtanh.pop %v461
        %v470 = vtanh.pop %v462
        %v471 = vtanh.pop %v463
        %v472 = vtanh.pop %v464
        %v473 = vtanh.pop %v465
        %v474 = vtanh.pop %v466
        %v475 = vtanh.pop %v467
        %v476 = vtanh.pop %v468
        %v477 = vadd.f32 %v469, 1.0
        %v478 = vadd.f32 %v470, 1.0
        %v479 = vadd.f32 %v471, 1.0
        %v480 = vadd.f32 %v472, 1.0
        %v481 = vadd.f32 %v473, 1.0
        %v482 = vadd.f32 %v474, 1.0
        %v483 = vadd.f32 %v475, 1.0
        %v484 = vadd.f32 %v476, 1.0
        %v485 = vmul.f32 %v421, %v477
        %v486 = vmul.f32 %v422, %v478
        %v487 = vmul.f32 %v423, %v479
        %v488 = vmul.f32 %v424, %v480
        %v489 = vmul.f32 %v425, %v481
        %v490 = vmul.f32 %v426, %v482
        %v491 = vmul.f32 %v427, %v483
        %v492 = vmul.f32 %v428, %v484
        %v493 = vld [vmem:[%s4] sm:$0xff]
        %v494 = vld [vmem:[%s4 + $0x8] sm:$0xff]
        %v495 = vld [vmem:[%s4 + $0x10] sm:$0xff]
        %v496 = vld [vmem:[%s4 + $0x18] sm:$0xff]
        %497 = vrot.lane.b32.xlu0 %v485, 1
        %v498 = vpop.permute.xlu0 %497
        %499 = vrot.lane.b32.xlu0 %v487, 1
        %v500 = vpop.permute.xlu0 %499
        %501 = vrot.lane.b32.xlu0 %v489, 1
        %v502 = vpop.permute.xlu0 %501
        %503 = vrot.lane.b32.xlu0 %v491, 1
        %v504 = vpop.permute.xlu0 %503
        %505 = vrot.lane.b32.xlu0 %v486, 1
        %v506 = vpop.permute.xlu0 %505
        %507 = vrot.lane.b32.xlu0 %v488, 1
        %v508 = vpop.permute.xlu0 %507
        %509 = vrot.lane.b32.xlu0 %v490, 1
        %v510 = vpop.permute.xlu0 %509
        %511 = vrot.lane.b32.xlu0 %v492, 1
        %v512 = vpop.permute.xlu0 %511
        %v513 = vlaneseq
        %v514 = vand.u32 %v513, 127
        %vm515 = vcmp.lt.s32.totalorder %v514, 1
        %v516 = vsel %vm515, %v498, %v506
        %v517 = vsel %vm515, %v500, %v508
        %v518 = vsel %vm515, %v502, %v510
        %v519 = vsel %vm515, %v504, %v512
        %v520 = vsel %vm515, %v506, %v498
        %v521 = vsel %vm515, %v508, %v500
        %v522 = vsel %vm515, %v510, %v502
        %v523 = vsel %vm515, %v512, %v504
        %v525 = vlaneseq
        %v526 = vshrl.u32 %v525, 7
        %v527 = vsub.s32 0, %v526
        %v528 = vrot.slane %v305, %v527
        %v529 = vlaneseq
        %v530 = vshrl.u32 %v529, 7
        %v531 = vsub.s32 1, %v530
        %v532 = vrot.slane %v305, %v531
        %v535 = vmul.f32 %v520, %v528
        %v536 = vmul.f32 %v516, %v532
        %v537 = vmul.f32 %v521, %v528
        %v538 = vmul.f32 %v517, %v532
        %v539 = vmul.f32 %v522, %v528
        %v540 = vmul.f32 %v518, %v532
        %v541 = vmul.f32 %v523, %v528
        %v542 = vmul.f32 %v519, %v532
        %543 = vrot.lane.b32.xlu0 %v485, 127
        %v544 = vpop.permute.xlu0 %543
        %545 = vrot.lane.b32.xlu0 %v487, 127
        %v546 = vpop.permute.xlu0 %545
        %547 = vrot.lane.b32.xlu0 %v489, 127
        %v548 = vpop.permute.xlu0 %547
        %549 = vrot.lane.b32.xlu0 %v491, 127
        %v550 = vpop.permute.xlu0 %549
        %551 = vrot.lane.b32.xlu0 %v486, 127
        %v552 = vpop.permute.xlu0 %551
        %553 = vrot.lane.b32.xlu0 %v488, 127
        %v554 = vpop.permute.xlu0 %553
        %555 = vrot.lane.b32.xlu0 %v490, 127
        %v556 = vpop.permute.xlu0 %555
        %557 = vrot.lane.b32.xlu0 %v492, 127
        %v558 = vpop.permute.xlu0 %557
        %vm559 = vcmp.lt.s32.totalorder %v514, 127
        %v560 = vsel %vm559, %v544, %v552
        %v561 = vsel %vm559, %v546, %v554
        %v562 = vsel %vm559, %v548, %v556
        %v563 = vsel %vm559, %v550, %v558
        %v564 = vsel %vm559, %v552, %v544
        %v565 = vsel %vm559, %v554, %v546
        %v566 = vsel %vm559, %v556, %v548
        %v567 = vsel %vm559, %v558, %v550
        %v569 = vlaneseq
        %v570 = vshrl.u32 %v569, 7
        %v571 = vsub.s32 0, %v570
        %v572 = vrot.slane %v307, %v571
        %v573 = vlaneseq
        %v574 = vshrl.u32 %v573, 7
        %v575 = vsub.s32 1, %v574
        %v576 = vrot.slane %v307, %v575
        %v579 = vmul.f32 %v560, %v572
        %v580 = vmul.f32 %v564, %v576
        %v581 = vmul.f32 %v561, %v572
        %v582 = vmul.f32 %v565, %v576
        %v583 = vmul.f32 %v562, %v572
        %v584 = vmul.f32 %v566, %v576
        %v585 = vmul.f32 %v563, %v572
        %v586 = vmul.f32 %v567, %v576
        %588 = vset.pattern.permute.xlu0 0
        %589 = vperm.xlu0 %588, %v493
        %v590 = vpop.permute.xlu0 %589
        %593 = vset.pattern.permute.xlu0 0
        %594 = vperm.xlu0 %593, %v494
        %v595 = vpop.permute.xlu0 %594
        %598 = vset.pattern.permute.xlu0 0
        %599 = vperm.xlu0 %598, %v495
        %v600 = vpop.permute.xlu0 %599
        %603 = vset.pattern.permute.xlu0 0
        %604 = vperm.xlu0 %603, %v496
        %v605 = vpop.permute.xlu0 %604
        %v607 = vmul.f32 %v590, %v535
        %v608 = vmul.f32 %v590, %v536
        %v609 = vmul.f32 %v595, %v537
        %v610 = vmul.f32 %v595, %v538
        %v611 = vmul.f32 %v600, %v539
        %v612 = vmul.f32 %v600, %v540
        %v613 = vmul.f32 %v605, %v541
        %v614 = vmul.f32 %v605, %v542
        %615 = vset.pattern.permute.xlu0 1
        %616 = vperm.xlu0 %615, %v493
        %v617 = vpop.permute.xlu0 %616
        %619 = vset.pattern.permute.xlu0 1
        %620 = vperm.xlu0 %619, %v494
        %v621 = vpop.permute.xlu0 %620
        %623 = vset.pattern.permute.xlu0 1
        %624 = vperm.xlu0 %623, %v495
        %v625 = vpop.permute.xlu0 %624
        %627 = vset.pattern.permute.xlu0 1
        %628 = vperm.xlu0 %627, %v496
        %v629 = vpop.permute.xlu0 %628
        %v631 = vmul.f32 %v617, %v485
        %v632 = vmul.f32 %v617, %v486
        %v633 = vmul.f32 %v621, %v487
        %v634 = vmul.f32 %v621, %v488
        %v635 = vmul.f32 %v625, %v489
        %v636 = vmul.f32 %v625, %v490
        %v637 = vmul.f32 %v629, %v491
        %v638 = vmul.f32 %v629, %v492
        %v639 = vadd.f32 %v607, %v631
        %v640 = vadd.f32 %v608, %v632
        %v641 = vadd.f32 %v609, %v633
        %v642 = vadd.f32 %v610, %v634
        %v643 = vadd.f32 %v611, %v635
        %v644 = vadd.f32 %v612, %v636
        %v645 = vadd.f32 %v613, %v637
        %v646 = vadd.f32 %v614, %v638
        %647 = vset.pattern.permute.xlu0 2
        %648 = vperm.xlu0 %647, %v493
        %v649 = vpop.permute.xlu0 %648
        %651 = vset.pattern.permute.xlu0 2
        %652 = vperm.xlu0 %651, %v494
        %v653 = vpop.permute.xlu0 %652
        %655 = vset.pattern.permute.xlu0 2
        %656 = vperm.xlu0 %655, %v495
        %v657 = vpop.permute.xlu0 %656
        %659 = vset.pattern.permute.xlu0 2
        %660 = vperm.xlu0 %659, %v496
        %v661 = vpop.permute.xlu0 %660
        %v663 = vmul.f32 %v649, %v579
        %v664 = vmul.f32 %v649, %v580
        %v665 = vmul.f32 %v653, %v581
        %v666 = vmul.f32 %v653, %v582
        %v667 = vmul.f32 %v657, %v583
        %v668 = vmul.f32 %v657, %v584
        %v669 = vmul.f32 %v661, %v585
        %v670 = vmul.f32 %v661, %v586
        %v671 = vadd.f32 %v639, %v663
        %v672 = vadd.f32 %v640, %v664
        %v673 = vadd.f32 %v641, %v665
        %v674 = vadd.f32 %v642, %v666
        %v675 = vadd.f32 %v643, %v667
        %v676 = vadd.f32 %v644, %v668
        %v677 = vadd.f32 %v645, %v669
        %v678 = vadd.f32 %v646, %v670
        %679 = vrot.lane.b32.xlu0 %v671, 16
        %v680 = vpop.permute.xlu0 %679
        %681 = vrot.lane.b32.xlu0 %v673, 16
        %v682 = vpop.permute.xlu0 %681
        %683 = vrot.lane.b32.xlu0 %v675, 16
        %v684 = vpop.permute.xlu0 %683
        %685 = vrot.lane.b32.xlu0 %v677, 16
        %v686 = vpop.permute.xlu0 %685
        %687 = vrot.lane.b32.xlu0 %v672, 16
        %v688 = vpop.permute.xlu0 %687
        %689 = vrot.lane.b32.xlu0 %v674, 16
        %v690 = vpop.permute.xlu0 %689
        %691 = vrot.lane.b32.xlu0 %v676, 16
        %v692 = vpop.permute.xlu0 %691
        %693 = vrot.lane.b32.xlu0 %v678, 16
        %v694 = vpop.permute.xlu0 %693
        %vm695 = vcmp.lt.s32.totalorder %v514, 16
        %v696 = vsel %vm695, %v680, %v688
        %v697 = vsel %vm695, %v682, %v690
        %v698 = vsel %vm695, %v684, %v692
        %v699 = vsel %vm695, %v686, %v694
        %v700 = vsel %vm695, %v688, %v680
        %v701 = vsel %vm695, %v690, %v682
        %v702 = vsel %vm695, %v692, %v684
        %v703 = vsel %vm695, %v694, %v686
        %v705 = vlaneseq
        %v706 = vshrl.u32 %v705, 7
        %v707 = vsub.s32 0, %v706
        %v708 = vrot.slane %v309, %v707
        %v709 = vlaneseq
        %v710 = vshrl.u32 %v709, 7
        %v711 = vsub.s32 1, %v710
        %v712 = vrot.slane %v309, %v711
        %v715 = vmul.f32 %v700, %v708
        %v716 = vmul.f32 %v696, %v712
        %v717 = vmul.f32 %v701, %v708
        %v718 = vmul.f32 %v697, %v712
        %v719 = vmul.f32 %v702, %v708
        %v720 = vmul.f32 %v698, %v712
        %v721 = vmul.f32 %v703, %v708
        %v722 = vmul.f32 %v699, %v712
        %723 = vset.pattern.permute.xlu0 3
        %724 = vperm.xlu0 %723, %v493
        %v725 = vpop.permute.xlu0 %724
        %727 = vset.pattern.permute.xlu0 3
        %728 = vperm.xlu0 %727, %v494
        %v729 = vpop.permute.xlu0 %728
        %731 = vset.pattern.permute.xlu0 3
        %732 = vperm.xlu0 %731, %v495
        %v733 = vpop.permute.xlu0 %732
        %735 = vset.pattern.permute.xlu0 3
        %736 = vperm.xlu0 %735, %v496
        %v737 = vpop.permute.xlu0 %736
        %v739 = vmul.f32 %v725, %v535
        %v740 = vmul.f32 %v725, %v536
        %v741 = vmul.f32 %v729, %v537
        %v742 = vmul.f32 %v729, %v538
        %v743 = vmul.f32 %v733, %v539
        %v744 = vmul.f32 %v733, %v540
        %v745 = vmul.f32 %v737, %v541
        %v746 = vmul.f32 %v737, %v542
        %747 = vset.pattern.permute.xlu0 4
        %748 = vperm.xlu0 %747, %v493
        %v749 = vpop.permute.xlu0 %748
        %751 = vset.pattern.permute.xlu0 4
        %752 = vperm.xlu0 %751, %v494
        %v753 = vpop.permute.xlu0 %752
        %755 = vset.pattern.permute.xlu0 4
        %756 = vperm.xlu0 %755, %v495
        %v757 = vpop.permute.xlu0 %756
        %759 = vset.pattern.permute.xlu0 4
        %760 = vperm.xlu0 %759, %v496
        %v761 = vpop.permute.xlu0 %760
        %v763 = vmul.f32 %v749, %v485
        %v764 = vmul.f32 %v749, %v486
        %v765 = vmul.f32 %v753, %v487
        %v766 = vmul.f32 %v753, %v488
        %v767 = vmul.f32 %v757, %v489
        %v768 = vmul.f32 %v757, %v490
        %v769 = vmul.f32 %v761, %v491
        %v770 = vmul.f32 %v761, %v492
        %v771 = vadd.f32 %v739, %v763
        %v772 = vadd.f32 %v740, %v764
        %v773 = vadd.f32 %v741, %v765
        %v774 = vadd.f32 %v742, %v766
        %v775 = vadd.f32 %v743, %v767
        %v776 = vadd.f32 %v744, %v768
        %v777 = vadd.f32 %v745, %v769
        %v778 = vadd.f32 %v746, %v770
        %779 = vset.pattern.permute.xlu0 5
        %780 = vperm.xlu0 %779, %v493
        %v781 = vpop.permute.xlu0 %780
        %783 = vset.pattern.permute.xlu0 5
        %784 = vperm.xlu0 %783, %v494
        %v785 = vpop.permute.xlu0 %784
        %787 = vset.pattern.permute.xlu0 5
        %788 = vperm.xlu0 %787, %v495
        %v789 = vpop.permute.xlu0 %788
        %791 = vset.pattern.permute.xlu0 5
        %792 = vperm.xlu0 %791, %v496
        %v793 = vpop.permute.xlu0 %792
        %v795 = vmul.f32 %v781, %v579
        %v796 = vmul.f32 %v781, %v580
        %v797 = vmul.f32 %v785, %v581
        %v798 = vmul.f32 %v785, %v582
        %v799 = vmul.f32 %v789, %v583
        %v800 = vmul.f32 %v789, %v584
        %v801 = vmul.f32 %v793, %v585
        %v802 = vmul.f32 %v793, %v586
        %v803 = vadd.f32 %v771, %v795
        %v804 = vadd.f32 %v772, %v796
        %v805 = vadd.f32 %v773, %v797
        %v806 = vadd.f32 %v774, %v798
        %v807 = vadd.f32 %v775, %v799
        %v808 = vadd.f32 %v776, %v800
        %v809 = vadd.f32 %v777, %v801
        %v810 = vadd.f32 %v778, %v802
        %v811 = vadd.f32 %v715, %v803
        %v812 = vadd.f32 %v716, %v804
        %v813 = vadd.f32 %v717, %v805
        %v814 = vadd.f32 %v718, %v806
        %v815 = vadd.f32 %v719, %v807
        %v816 = vadd.f32 %v720, %v808
        %v817 = vadd.f32 %v721, %v809
        %v818 = vadd.f32 %v722, %v810
        %819 = vset.pattern.permute.xlu0 6
        %820 = vperm.xlu0 %819, %v493
        %v821 = vpop.permute.xlu0 %820
        %823 = vset.pattern.permute.xlu0 6
        %824 = vperm.xlu0 %823, %v494
        %v825 = vpop.permute.xlu0 %824
        %827 = vset.pattern.permute.xlu0 6
        %828 = vperm.xlu0 %827, %v495
        %v829 = vpop.permute.xlu0 %828
        %831 = vset.pattern.permute.xlu0 6
        %832 = vperm.xlu0 %831, %v496
        %v833 = vpop.permute.xlu0 %832
        %v835 = vmul.f32 %v821, %v535
        %v836 = vmul.f32 %v821, %v536
        %v837 = vmul.f32 %v825, %v537
        %v838 = vmul.f32 %v825, %v538
        %v839 = vmul.f32 %v829, %v539
        %v840 = vmul.f32 %v829, %v540
        %v841 = vmul.f32 %v833, %v541
        %v842 = vmul.f32 %v833, %v542
        %843 = vset.pattern.permute.xlu0 7
        %844 = vperm.xlu0 %843, %v493
        %v845 = vpop.permute.xlu0 %844
        %847 = vset.pattern.permute.xlu0 7
        %848 = vperm.xlu0 %847, %v494
        %v849 = vpop.permute.xlu0 %848
        %851 = vset.pattern.permute.xlu0 7
        %852 = vperm.xlu0 %851, %v495
        %v853 = vpop.permute.xlu0 %852
        %855 = vset.pattern.permute.xlu0 7
        %856 = vperm.xlu0 %855, %v496
        %v857 = vpop.permute.xlu0 %856
        %v859 = vmul.f32 %v845, %v485
        %v860 = vmul.f32 %v845, %v486
        %v861 = vmul.f32 %v849, %v487
        %v862 = vmul.f32 %v849, %v488
        %v863 = vmul.f32 %v853, %v489
        %v864 = vmul.f32 %v853, %v490
        %v865 = vmul.f32 %v857, %v491
        %v866 = vmul.f32 %v857, %v492
        %v867 = vadd.f32 %v835, %v859
        %v868 = vadd.f32 %v836, %v860
        %v869 = vadd.f32 %v837, %v861
        %v870 = vadd.f32 %v838, %v862
        %v871 = vadd.f32 %v839, %v863
        %v872 = vadd.f32 %v840, %v864
        %v873 = vadd.f32 %v841, %v865
        %v874 = vadd.f32 %v842, %v866
        %875 = vset.pattern.permute.xlu0 8
        %876 = vperm.xlu0 %875, %v493
        %v877 = vpop.permute.xlu0 %876
        %879 = vset.pattern.permute.xlu0 8
        %880 = vperm.xlu0 %879, %v494
        %v881 = vpop.permute.xlu0 %880
        %883 = vset.pattern.permute.xlu0 8
        %884 = vperm.xlu0 %883, %v495
        %v885 = vpop.permute.xlu0 %884
        %887 = vset.pattern.permute.xlu0 8
        %888 = vperm.xlu0 %887, %v496
        %v889 = vpop.permute.xlu0 %888
        %v891 = vmul.f32 %v877, %v579
        %v892 = vmul.f32 %v877, %v580
        %v893 = vmul.f32 %v881, %v581
        %v894 = vmul.f32 %v881, %v582
        %v895 = vmul.f32 %v885, %v583
        %v896 = vmul.f32 %v885, %v584
        %v897 = vmul.f32 %v889, %v585
        %v898 = vmul.f32 %v889, %v586
        %v899 = vadd.f32 %v867, %v891
        %v900 = vadd.f32 %v868, %v892
        %v901 = vadd.f32 %v869, %v893
        %v902 = vadd.f32 %v870, %v894
        %v903 = vadd.f32 %v871, %v895
        %v904 = vadd.f32 %v872, %v896
        %v905 = vadd.f32 %v873, %v897
        %v906 = vadd.f32 %v874, %v898
        %907 = vrot.lane.b32.xlu0 %v899, 112
        %v908 = vpop.permute.xlu0 %907
        %909 = vrot.lane.b32.xlu0 %v901, 112
        %v910 = vpop.permute.xlu0 %909
        %911 = vrot.lane.b32.xlu0 %v903, 112
        %v912 = vpop.permute.xlu0 %911
        %913 = vrot.lane.b32.xlu0 %v905, 112
        %v914 = vpop.permute.xlu0 %913
        %915 = vrot.lane.b32.xlu0 %v900, 112
        %v916 = vpop.permute.xlu0 %915
        %917 = vrot.lane.b32.xlu0 %v902, 112
        %v918 = vpop.permute.xlu0 %917
        %919 = vrot.lane.b32.xlu0 %v904, 112
        %v920 = vpop.permute.xlu0 %919
        %921 = vrot.lane.b32.xlu0 %v906, 112
        %v922 = vpop.permute.xlu0 %921
        %vm923 = vcmp.lt.s32.totalorder %v514, 112
        %v924 = vsel %vm923, %v908, %v916
        %v925 = vsel %vm923, %v910, %v918
        %v926 = vsel %vm923, %v912, %v920
        %v927 = vsel %vm923, %v914, %v922
        %v928 = vsel %vm923, %v916, %v908
        %v929 = vsel %vm923, %v918, %v910
        %v930 = vsel %vm923, %v920, %v912
        %v931 = vsel %vm923, %v922, %v914
        %v933 = vlaneseq
        %v934 = vshrl.u32 %v933, 7
        %v935 = vsub.s32 0, %v934
        %v936 = vrot.slane %v311, %v935
        %v937 = vlaneseq
        %v938 = vshrl.u32 %v937, 7
        %v939 = vsub.s32 1, %v938
        %v940 = vrot.slane %v311, %v939
        %v943 = vmul.f32 %v924, %v936
        %v944 = vmul.f32 %v928, %v940
        %v945 = vmul.f32 %v925, %v936
        %v946 = vmul.f32 %v929, %v940
        %v947 = vmul.f32 %v926, %v936
        %v948 = vmul.f32 %v930, %v940
        %v949 = vmul.f32 %v927, %v936
        %v950 = vmul.f32 %v931, %v940
        %v951 = vadd.f32 %v811, %v943
        %v952 = vadd.f32 %v812, %v944
        %v953 = vadd.f32 %v813, %v945
        %v954 = vadd.f32 %v814, %v946
        %v955 = vadd.f32 %v815, %v947
        %v956 = vadd.f32 %v816, %v948
        %v957 = vadd.f32 %v817, %v949
        %v958 = vadd.f32 %v818, %v950
        %v959 = vld [vmem:[%s5] sm:$0xff]
        %v960 = vld [vmem:[%s5 + $0x8] sm:$0xff]
        %v961 = vld [vmem:[%s5 + $0x10] sm:$0xff]
        %v962 = vld [vmem:[%s5 + $0x18] sm:$0xff]
        %964 = vset.pattern.permute.xlu0 0
        %965 = vperm.xlu0 %964, %v959
        %v966 = vpop.permute.xlu0 %965
        %969 = vset.pattern.permute.xlu0 0
        %970 = vperm.xlu0 %969, %v960
        %v971 = vpop.permute.xlu0 %970
        %974 = vset.pattern.permute.xlu0 0
        %975 = vperm.xlu0 %974, %v961
        %v976 = vpop.permute.xlu0 %975
        %979 = vset.pattern.permute.xlu0 0
        %980 = vperm.xlu0 %979, %v962
        %v981 = vpop.permute.xlu0 %980
        %v983 = vadd.f32 %v951, %v966
        %v984 = vadd.f32 %v952, %v966
        %v985 = vadd.f32 %v953, %v971
        %v986 = vadd.f32 %v954, %v971
        %v987 = vadd.f32 %v955, %v976
        %v988 = vadd.f32 %v956, %v976
        %v989 = vadd.f32 %v957, %v981
        %v990 = vadd.f32 %v958, %v981
        %v991 = vmul.f32 %v983, 0.5
        %v992 = vmul.f32 %v984, 0.5
        %v993 = vmul.f32 %v985, 0.5
        %v994 = vmul.f32 %v986, 0.5
        %v995 = vmul.f32 %v987, 0.5
        %v996 = vmul.f32 %v988, 0.5
        %v997 = vmul.f32 %v989, 0.5
        %v998 = vmul.f32 %v990, 0.5
        %v999 = vmul.f32 %v983, 0.044715
        %v1000 = vmul.f32 %v984, 0.044715
        %v1001 = vmul.f32 %v985, 0.044715
        %v1002 = vmul.f32 %v986, 0.044715
        %v1003 = vmul.f32 %v987, 0.044715
        %v1004 = vmul.f32 %v988, 0.044715
        %v1005 = vmul.f32 %v989, 0.044715
        %v1006 = vmul.f32 %v990, 0.044715
        %v1007 = vmul.f32 %v999, %v983
        %v1008 = vmul.f32 %v1000, %v984
        %v1009 = vmul.f32 %v1001, %v985
        %v1010 = vmul.f32 %v1002, %v986
        %v1011 = vmul.f32 %v1003, %v987
        %v1012 = vmul.f32 %v1004, %v988
        %v1013 = vmul.f32 %v1005, %v989
        %v1014 = vmul.f32 %v1006, %v990
        %v1015 = vmul.f32 %v1007, %v983
        %v1016 = vmul.f32 %v1008, %v984
        %v1017 = vmul.f32 %v1009, %v985
        %v1018 = vmul.f32 %v1010, %v986
        %v1019 = vmul.f32 %v1011, %v987
        %v1020 = vmul.f32 %v1012, %v988
        %v1021 = vmul.f32 %v1013, %v989
        %v1022 = vmul.f32 %v1014, %v990
        %v1023 = vadd.f32 %v983, %v1015
        %v1024 = vadd.f32 %v984, %v1016
        %v1025 = vadd.f32 %v985, %v1017
        %v1026 = vadd.f32 %v986, %v1018
        %v1027 = vadd.f32 %v987, %v1019
        %v1028 = vadd.f32 %v988, %v1020
        %v1029 = vadd.f32 %v989, %v1021
        %v1030 = vadd.f32 %v990, %v1022
        %v1031 = vmul.f32 %v1023, 0.7978846
        %v1032 = vmul.f32 %v1024, 0.7978846
        %v1033 = vmul.f32 %v1025, 0.7978846
        %v1034 = vmul.f32 %v1026, 0.7978846
        %v1035 = vmul.f32 %v1027, 0.7978846
        %v1036 = vmul.f32 %v1028, 0.7978846
        %v1037 = vmul.f32 %v1029, 0.7978846
        %v1038 = vmul.f32 %v1030, 0.7978846
        %v1039 = vtanh.pop %v1031
        %v1040 = vtanh.pop %v1032
        %v1041 = vtanh.pop %v1033
        %v1042 = vtanh.pop %v1034
        %v1043 = vtanh.pop %v1035
        %v1044 = vtanh.pop %v1036
        %v1045 = vtanh.pop %v1037
        %v1046 = vtanh.pop %v1038
        %v1047 = vadd.f32 %v1039, 1.0
        %v1048 = vadd.f32 %v1040, 1.0
        %v1049 = vadd.f32 %v1041, 1.0
        %v1050 = vadd.f32 %v1042, 1.0
        %v1051 = vadd.f32 %v1043, 1.0
        %v1052 = vadd.f32 %v1044, 1.0
        %v1053 = vadd.f32 %v1045, 1.0
        %v1054 = vadd.f32 %v1046, 1.0
        %v1055 = vmul.f32 %v991, %v1047
        %v1056 = vmul.f32 %v992, %v1048
        %v1057 = vmul.f32 %v993, %v1049
        %v1058 = vmul.f32 %v994, %v1050
        %v1059 = vmul.f32 %v995, %v1051
        %v1060 = vmul.f32 %v996, %v1052
        %v1061 = vmul.f32 %v997, %v1053
        %v1062 = vmul.f32 %v998, %v1054
        %v1063 = vld [vmem:[%s6] sm:$0xf]
        %v1064 = vpack.c.bf16 %v1057, %v1055
        %v1065 = vpack.c.bf16 %v1058, %v1056
        %v1066 = vpack.c.bf16 %v1061, %v1059
        %v1067 = vpack.c.bf16 %v1062, %v1060
        %v1068 = vld [vmem:[%s7] sm:$0xff]
        %1070 = vset.pattern.permute.xlu0 0
        %1071 = vperm.xlu0 %1070, %v1068
        %v1072 = vpop.permute.xlu0 %1071
        %vm1074 = vcmask 261120
        %v1076 = vsel %vm1074, %v1063, 0
        %1078 = vmatprep.subr.bf16.mxu0 %v1065
        %1079 = vmatpush1.bf16.msra.mxu0 %v1064
        %1080 = vmatprep.subr.bf16.mxu0 %v1067
        %1081 = vmatpush1.bf16.msra.mxu0 %v1066
        %1082 = vmatprep.subr.bf16.mxu0 0
        %1083 = vmatpush1.bf16.msra.mxu0 0
        %1084 = vmatprep.subr.bf16.mxu0 0
        %1085 = vmatpush1.bf16.msra.mxu0 0
        %1086 = vmatprep.subr.bf16.mxu0 0
        %1087 = vmatpush1.bf16.msra.mxu0 0
        %1088 = vmatprep.subr.bf16.mxu0 0
        %1089 = vmatpush1.bf16.msra.mxu0 0
        %1090 = vmatprep.subr.bf16.mxu0 0
        %1091 = vmatpush1.bf16.msra.mxu0 0
        %1092 = vmatprep.subr.bf16.mxu0 0
        %1093 = vmatpush1.bf16.msra.mxu0 0
        %1094 = vmatprep.subr.bf16.mxu0 0
        %1095 = vmatpush1.bf16.msra.mxu0 0
        %1096 = vmatprep.subr.bf16.mxu0 0
        %1097 = vmatpush1.bf16.msra.mxu0 0
        %1098 = vmatprep.subr.bf16.mxu0 0
        %1099 = vmatpush1.bf16.msra.mxu0 0
        %1100 = vmatprep.subr.bf16.mxu0 0
        %1101 = vmatpush1.bf16.msra.mxu0 0
        %1102 = vmatprep.subr.bf16.mxu0 0
        %1103 = vmatpush1.bf16.msra.mxu0 0
        %1104 = vmatprep.subr.bf16.mxu0 0
        %1105 = vmatpush1.bf16.msra.mxu0 0
        %1106 = vmatprep.subr.bf16.mxu0 0
        %1107 = vmatpush1.bf16.msra.mxu0 0
        %1108 = vmatprep.subr.bf16.mxu0 0
        %1109 = vmatpush1.bf16.msra.mxu0 0
        %1110 = vmatprep.mubr.bf16.mxu0 0
        %1111 = vmatmul.mubr.bf16.gmra.mrb[0].mxu0 %v1076
        %v1112 = vpop.f32.mrb[0].mxu0
        %v1113 = vadd.f32 %v1072, %v1112
        %v1114 = vpop.f32.mrb[0].mxu0
        %v1115 = vadd.f32 %v1072, %v1114
        %v1116 = vpop.f32.mrb[0].mxu0
        %v1117 = vpop.f32.mrb[0].mxu0
        %1118 = vdwg.mxu0
        %v1119 = vadd.f32 %v1113, %v312
        %v1120 = vadd.f32 %v1115, %v313
        %v1121 = vmul.f32 %v1119, 0.5
        %v1122 = vmul.f32 %v1120, 0.5
        %v1123 = vmul.f32 %v1119, 0.044715
        %v1124 = vmul.f32 %v1120, 0.044715
        %v1125 = vmul.f32 %v1123, %v1119
        %v1126 = vmul.f32 %v1124, %v1120
        %v1127 = vmul.f32 %v1125, %v1119
        %v1128 = vmul.f32 %v1126, %v1120
        %v1129 = vadd.f32 %v1119, %v1127
        %v1130 = vadd.f32 %v1120, %v1128
        %v1131 = vmul.f32 %v1129, 0.7978846
        %v1132 = vmul.f32 %v1130, 0.7978846
        %v1133 = vtanh.pop %v1131
        %v1134 = vtanh.pop %v1132
        %v1135 = vadd.f32 %v1133, 1.0
        %v1136 = vadd.f32 %v1134, 1.0
        %v1137 = vmul.f32 %v1121, %v1135
        %v1138 = vmul.f32 %v1122, %v1136
        %s1139 = scalar_lea.vmem %s2, 16
        %v1140 = vld [vmem:[%s1139] sm:$0xf]
        %v1141 = vld [vmem:[%s1139 + $0x4] sm:$0xf]
        %v1142 = vld [vmem:[%s1139 + $0x8] sm:$0xf]
        %v1143 = vld [vmem:[%s1139 + $0xc] sm:$0xf]
        %v1144 = vpack.c.bf16 %v1137, %v1137
        %v1145 = vpack.c.bf16 %v1138, %v1138
        %s1146 = scalar_lea.vmem %s3, 32
        %v1147 = vld [vmem:[%s1146] sm:$0xff]
        %v1148 = vld [vmem:[%s1146 + $0x8] sm:$0xff]
        %v1149 = vld [vmem:[%s1146 + $0x10] sm:$0xff]
        %v1150 = vld [vmem:[%s1146 + $0x18] sm:$0xff]
        %1152 = vset.pattern.permute.xlu0 0
        %1153 = vperm.xlu0 %1152, %v1147
        %v1154 = vpop.permute.xlu0 %1153
        %1157 = vset.pattern.permute.xlu0 0
        %1158 = vperm.xlu0 %1157, %v1148
        %v1159 = vpop.permute.xlu0 %1158
        %1162 = vset.pattern.permute.xlu0 0
        %1163 = vperm.xlu0 %1162, %v1149
        %v1164 = vpop.permute.xlu0 %1163
        %1167 = vset.pattern.permute.xlu0 0
        %1168 = vperm.xlu0 %1167, %v1150
        %v1169 = vpop.permute.xlu0 %1168
        %v1175 = vunpack.c.l.b16 %v1140
        %v1176 = vunpack.c.l.b16 %v1141
        %v1177 = vunpack.c.l.b16 %v1142
        %v1178 = vunpack.c.l.b16 %v1143
        %v1179 = vpack.c.b16 %v1176, %v1175
        %v1180 = vpack.c.b16 %v1178, %v1177
        %v1182 = vsel %vm354, %v1179, 0
        %v1185 = vsel %vm354, %v1180, 0
        %v1188 = vsel %vm361, %v1144, 0
        %v1191 = vsel %vm361, %v1145, 0
        %1193 = vmatprep.subr.bf16.mxu0 %v1191
        %1194 = vmatpush1.bf16.msra.mxu0 %v1188
        %1195 = vmatprep.subr.bf16.mxu0 0
        %1196 = vmatpush1.bf16.msra.mxu0 0
        %1197 = vmatprep.subr.bf16.mxu0 0
        %1198 = vmatpush1.bf16.msra.mxu0 0
        %1199 = vmatprep.subr.bf16.mxu0 0
        %1200 = vmatpush1.bf16.msra.mxu0 0
        %1201 = vmatprep.subr.bf16.mxu0 0
        %1202 = vmatpush1.bf16.msra.mxu0 0
        %1203 = vmatprep.subr.bf16.mxu0 0
        %1204 = vmatpush1.bf16.msra.mxu0 0
        %1205 = vmatprep.subr.bf16.mxu0 0
        %1206 = vmatpush1.bf16.msra.mxu0 0
        %1207 = vmatprep.subr.bf16.mxu0 0
        %1208 = vmatpush1.bf16.msra.mxu0 0
        %1209 = vmatprep.subr.bf16.mxu0 0
        %1210 = vmatpush1.bf16.msra.mxu0 0
        %1211 = vmatprep.subr.bf16.mxu0 0
        %1212 = vmatpush1.bf16.msra.mxu0 0
        %1213 = vmatprep.subr.bf16.mxu0 0
        %1214 = vmatpush1.bf16.msra.mxu0 0
        %1215 = vmatprep.subr.bf16.mxu0 0
        %1216 = vmatpush1.bf16.msra.mxu0 0
        %1217 = vmatprep.subr.bf16.mxu0 0
        %1218 = vmatpush1.bf16.msra.mxu0 0
        %1219 = vmatprep.subr.bf16.mxu0 0
        %1220 = vmatpush1.bf16.msra.mxu0 0
        %1221 = vmatprep.subr.bf16.mxu0 0
        %1222 = vmatpush1.bf16.msra.mxu0 0
        %1223 = vmatprep.subr.bf16.mxu0 0
        %1224 = vmatpush1.bf16.msra.mxu0 0
        %1225 = vmatprep.mubr.bf16.mxu0 0
        %1226 = vmatmul.mubr.bf16.gmra.mrb[0].mxu0 %v1182
        %v1227 = vpop.f32.mrb[0].mxu0
        %v1228 = vadd.f32 %v1154, %v1227
        %v1229 = vpop.f32.mrb[0].mxu0
        %v1230 = vadd.f32 %v1154, %v1229
        %v1231 = vpop.f32.mrb[0].mxu0
        %v1232 = vadd.f32 %v1159, %v1231
        %v1233 = vpop.f32.mrb[0].mxu0
        %v1234 = vadd.f32 %v1159, %v1233
        %1235 = vmatprep.mubr.bf16.mxu0 0
        %1236 = vmatmul.mubr.bf16.gmra.mrb[0].mxu0 %v1185
        %v1237 = vpop.f32.mrb[0].mxu0
        %v1238 = vadd.f32 %v1164, %v1237
        %v1239 = vpop.f32.mrb[0].mxu0
        %v1240 = vadd.f32 %v1164, %v1239
        %v1241 = vpop.f32.mrb[0].mxu0
        %v1242 = vadd.f32 %v1169, %v1241
        %v1243 = vpop.f32.mrb[0].mxu0
        %v1244 = vadd.f32 %v1169, %v1243
        %1245 = vdwg.mxu0
        %v1246 = vmul.f32 %v1228, 0.5
        %v1247 = vmul.f32 %v1230, 0.5
        %v1248 = vmul.f32 %v1232, 0.5
        %v1249 = vmul.f32 %v1234, 0.5
        %v1250 = vmul.f32 %v1238, 0.5
        %v1251 = vmul.f32 %v1240, 0.5
        %v1252 = vmul.f32 %v1242, 0.5
        %v1253 = vmul.f32 %v1244, 0.5
        %v1254 = vmul.f32 %v1228, 0.044715
        %v1255 = vmul.f32 %v1230, 0.044715
        %v1256 = vmul.f32 %v1232, 0.044715
        %v1257 = vmul.f32 %v1234, 0.044715
        %v1258 = vmul.f32 %v1238, 0.044715
        %v1259 = vmul.f32 %v1240, 0.044715
        %v1260 = vmul.f32 %v1242, 0.044715
        %v1261 = vmul.f32 %v1244, 0.044715
        %v1262 = vmul.f32 %v1254, %v1228
        %v1263 = vmul.f32 %v1255, %v1230
        %v1264 = vmul.f32 %v1256, %v1232
        %v1265 = vmul.f32 %v1257, %v1234
        %v1266 = vmul.f32 %v1258, %v1238
        %v1267 = vmul.f32 %v1259, %v1240
        %v1268 = vmul.f32 %v1260, %v1242
        %v1269 = vmul.f32 %v1261, %v1244
        %v1270 = vmul.f32 %v1262, %v1228
        %v1271 = vmul.f32 %v1263, %v1230
        %v1272 = vmul.f32 %v1264, %v1232
        %v1273 = vmul.f32 %v1265, %v1234
        %v1274 = vmul.f32 %v1266, %v1238
        %v1275 = vmul.f32 %v1267, %v1240
        %v1276 = vmul.f32 %v1268, %v1242
        %v1277 = vmul.f32 %v1269, %v1244
        %v1278 = vadd.f32 %v1228, %v1270
        %v1279 = vadd.f32 %v1230, %v1271
        %v1280 = vadd.f32 %v1232, %v1272
        %v1281 = vadd.f32 %v1234, %v1273
        %v1282 = vadd.f32 %v1238, %v1274
        %v1283 = vadd.f32 %v1240, %v1275
        %v1284 = vadd.f32 %v1242, %v1276
        %v1285 = vadd.f32 %v1244, %v1277
        %v1286 = vmul.f32 %v1278, 0.7978846
        %v1287 = vmul.f32 %v1279, 0.7978846
        %v1288 = vmul.f32 %v1280, 0.7978846
        %v1289 = vmul.f32 %v1281, 0.7978846
        %v1290 = vmul.f32 %v1282, 0.7978846
        %v1291 = vmul.f32 %v1283, 0.7978846
        %v1292 = vmul.f32 %v1284, 0.7978846
        %v1293 = vmul.f32 %v1285, 0.7978846
        %v1294 = vtanh.pop %v1286
        %v1295 = vtanh.pop %v1287
        %v1296 = vtanh.pop %v1288
        %v1297 = vtanh.pop %v1289
        %v1298 = vtanh.pop %v1290
        %v1299 = vtanh.pop %v1291
        %v1300 = vtanh.pop %v1292
        %v1301 = vtanh.pop %v1293
        %v1302 = vadd.f32 %v1294, 1.0
        %v1303 = vadd.f32 %v1295, 1.0
        %v1304 = vadd.f32 %v1296, 1.0
        %v1305 = vadd.f32 %v1297, 1.0
        %v1306 = vadd.f32 %v1298, 1.0
        %v1307 = vadd.f32 %v1299, 1.0
        %v1308 = vadd.f32 %v1300, 1.0
        %v1309 = vadd.f32 %v1301, 1.0
        %v1310 = vmul.f32 %v1246, %v1302
        %v1311 = vmul.f32 %v1247, %v1303
        %v1312 = vmul.f32 %v1248, %v1304
        %v1313 = vmul.f32 %v1249, %v1305
        %v1314 = vmul.f32 %v1250, %v1306
        %v1315 = vmul.f32 %v1251, %v1307
        %v1316 = vmul.f32 %v1252, %v1308
        %v1317 = vmul.f32 %v1253, %v1309
        %s1318 = scalar_lea.vmem %s4, 32
        %v1319 = vld [vmem:[%s1318] sm:$0xff]
        %v1320 = vld [vmem:[%s1318 + $0x8] sm:$0xff]
        %v1321 = vld [vmem:[%s1318 + $0x10] sm:$0xff]
        %v1322 = vld [vmem:[%s1318 + $0x18] sm:$0xff]
        %1323 = vrot.lane.b32.xlu0 %v1310, 1
        %v1324 = vpop.permute.xlu0 %1323
        %1325 = vrot.lane.b32.xlu0 %v1312, 1
        %v1326 = vpop.permute.xlu0 %1325
        %1327 = vrot.lane.b32.xlu0 %v1314, 1
        %v1328 = vpop.permute.xlu0 %1327
        %1329 = vrot.lane.b32.xlu0 %v1316, 1
        %v1330 = vpop.permute.xlu0 %1329
        %1331 = vrot.lane.b32.xlu0 %v1311, 1
        %v1332 = vpop.permute.xlu0 %1331
        %1333 = vrot.lane.b32.xlu0 %v1313, 1
        %v1334 = vpop.permute.xlu0 %1333
        %1335 = vrot.lane.b32.xlu0 %v1315, 1
        %v1336 = vpop.permute.xlu0 %1335
        %1337 = vrot.lane.b32.xlu0 %v1317, 1
        %v1338 = vpop.permute.xlu0 %1337
        %v1339 = vsel %vm515, %v1324, %v1332
        %v1340 = vsel %vm515, %v1326, %v1334
        %v1341 = vsel %vm515, %v1328, %v1336
        %v1342 = vsel %vm515, %v1330, %v1338
        %v1343 = vsel %vm515, %v1332, %v1324
        %v1344 = vsel %vm515, %v1334, %v1326
        %v1345 = vsel %vm515, %v1336, %v1328
        %v1346 = vsel %vm515, %v1338, %v1330
        %v1347 = vmul.f32 %v1343, %v528
        %v1348 = vmul.f32 %v1339, %v532
        %v1349 = vmul.f32 %v1344, %v528
        %v1350 = vmul.f32 %v1340, %v532
        %v1351 = vmul.f32 %v1345, %v528
        %v1352 = vmul.f32 %v1341, %v532
        %v1353 = vmul.f32 %v1346, %v528
        %v1354 = vmul.f32 %v1342, %v532
        %1355 = vrot.lane.b32.xlu0 %v1310, 127
        %v1356 = vpop.permute.xlu0 %1355
        %1357 = vrot.lane.b32.xlu0 %v1312, 127
        %v1358 = vpop.permute.xlu0 %1357
        %1359 = vrot.lane.b32.xlu0 %v1314, 127
        %v1360 = vpop.permute.xlu0 %1359
        %1361 = vrot.lane.b32.xlu0 %v1316, 127
        %v1362 = vpop.permute.xlu0 %1361
        %1363 = vrot.lane.b32.xlu0 %v1311, 127
        %v1364 = vpop.permute.xlu0 %1363
        %1365 = vrot.lane.b32.xlu0 %v1313, 127
        %v1366 = vpop.permute.xlu0 %1365
        %1367 = vrot.lane.b32.xlu0 %v1315, 127
        %v1368 = vpop.permute.xlu0 %1367
        %1369 = vrot.lane.b32.xlu0 %v1317, 127
        %v1370 = vpop.permute.xlu0 %1369
        %v1371 = vsel %vm559, %v1356, %v1364
        %v1372 = vsel %vm559, %v1358, %v1366
        %v1373 = vsel %vm559, %v1360, %v1368
        %v1374 = vsel %vm559, %v1362, %v1370
        %v1375 = vsel %vm559, %v1364, %v1356
        %v1376 = vsel %vm559, %v1366, %v1358
        %v1377 = vsel %vm559, %v1368, %v1360
        %v1378 = vsel %vm559, %v1370, %v1362
        %v1379 = vmul.f32 %v1371, %v572
        %v1380 = vmul.f32 %v1375, %v576
        %v1381 = vmul.f32 %v1372, %v572
        %v1382 = vmul.f32 %v1376, %v576
        %v1383 = vmul.f32 %v1373, %v572
        %v1384 = vmul.f32 %v1377, %v576
        %v1385 = vmul.f32 %v1374, %v572
        %v1386 = vmul.f32 %v1378, %v576
        %1388 = vset.pattern.permute.xlu0 0
        %1389 = vperm.xlu0 %1388, %v1319
        %v1390 = vpop.permute.xlu0 %1389
        %1393 = vset.pattern.permute.xlu0 0
        %1394 = vperm.xlu0 %1393, %v1320
        %v1395 = vpop.permute.xlu0 %1394
        %1398 = vset.pattern.permute.xlu0 0
        %1399 = vperm.xlu0 %1398, %v1321
        %v1400 = vpop.permute.xlu0 %1399
        %1403 = vset.pattern.permute.xlu0 0
        %1404 = vperm.xlu0 %1403, %v1322
        %v1405 = vpop.permute.xlu0 %1404
        %v1407 = vmul.f32 %v1390, %v1347
        %v1408 = vmul.f32 %v1390, %v1348
        %v1409 = vmul.f32 %v1395, %v1349
        %v1410 = vmul.f32 %v1395, %v1350
        %v1411 = vmul.f32 %v1400, %v1351
        %v1412 = vmul.f32 %v1400, %v1352
        %v1413 = vmul.f32 %v1405, %v1353
        %v1414 = vmul.f32 %v1405, %v1354
        %1415 = vset.pattern.permute.xlu0 1
        %1416 = vperm.xlu0 %1415, %v1319
        %v1417 = vpop.permute.xlu0 %1416
        %1419 = vset.pattern.permute.xlu0 1
        %1420 = vperm.xlu0 %1419, %v1320
        %v1421 = vpop.permute.xlu0 %1420
        %1423 = vset.pattern.permute.xlu0 1
        %1424 = vperm.xlu0 %1423, %v1321
        %v1425 = vpop.permute.xlu0 %1424
        %1427 = vset.pattern.permute.xlu0 1
        %1428 = vperm.xlu0 %1427, %v1322
        %v1429 = vpop.permute.xlu0 %1428
        %v1431 = vmul.f32 %v1417, %v1310
        %v1432 = vmul.f32 %v1417, %v1311
        %v1433 = vmul.f32 %v1421, %v1312
        %v1434 = vmul.f32 %v1421, %v1313
        %v1435 = vmul.f32 %v1425, %v1314
        %v1436 = vmul.f32 %v1425, %v1315
        %v1437 = vmul.f32 %v1429, %v1316
        %v1438 = vmul.f32 %v1429, %v1317
        %v1439 = vadd.f32 %v1407, %v1431
        %v1440 = vadd.f32 %v1408, %v1432
        %v1441 = vadd.f32 %v1409, %v1433
        %v1442 = vadd.f32 %v1410, %v1434
        %v1443 = vadd.f32 %v1411, %v1435
        %v1444 = vadd.f32 %v1412, %v1436
        %v1445 = vadd.f32 %v1413, %v1437
        %v1446 = vadd.f32 %v1414, %v1438
        %1447 = vset.pattern.permute.xlu0 2
        %1448 = vperm.xlu0 %1447, %v1319
        %v1449 = vpop.permute.xlu0 %1448
        %1451 = vset.pattern.permute.xlu0 2
        %1452 = vperm.xlu0 %1451, %v1320
        %v1453 = vpop.permute.xlu0 %1452
        %1455 = vset.pattern.permute.xlu0 2
        %1456 = vperm.xlu0 %1455, %v1321
        %v1457 = vpop.permute.xlu0 %1456
        %1459 = vset.pattern.permute.xlu0 2
        %1460 = vperm.xlu0 %1459, %v1322
        %v1461 = vpop.permute.xlu0 %1460
        %v1463 = vmul.f32 %v1449, %v1379
        %v1464 = vmul.f32 %v1449, %v1380
        %v1465 = vmul.f32 %v1453, %v1381
        %v1466 = vmul.f32 %v1453, %v1382
        %v1467 = vmul.f32 %v1457, %v1383
        %v1468 = vmul.f32 %v1457, %v1384
        %v1469 = vmul.f32 %v1461, %v1385
        %v1470 = vmul.f32 %v1461, %v1386
        %v1471 = vadd.f32 %v1439, %v1463
        %v1472 = vadd.f32 %v1440, %v1464
        %v1473 = vadd.f32 %v1441, %v1465
        %v1474 = vadd.f32 %v1442, %v1466
        %v1475 = vadd.f32 %v1443, %v1467
        %v1476 = vadd.f32 %v1444, %v1468
        %v1477 = vadd.f32 %v1445, %v1469
        %v1478 = vadd.f32 %v1446, %v1470
        %1479 = vrot.lane.b32.xlu0 %v1471, 16
        %v1480 = vpop.permute.xlu0 %1479
        %1481 = vrot.lane.b32.xlu0 %v1473, 16
        %v1482 = vpop.permute.xlu0 %1481
        %1483 = vrot.lane.b32.xlu0 %v1475, 16
        %v1484 = vpop.permute.xlu0 %1483
        %1485 = vrot.lane.b32.xlu0 %v1477, 16
        %v1486 = vpop.permute.xlu0 %1485
        %1487 = vrot.lane.b32.xlu0 %v1472, 16
        %v1488 = vpop.permute.xlu0 %1487
        %1489 = vrot.lane.b32.xlu0 %v1474, 16
        %v1490 = vpop.permute.xlu0 %1489
        %1491 = vrot.lane.b32.xlu0 %v1476, 16
        %v1492 = vpop.permute.xlu0 %1491
        %1493 = vrot.lane.b32.xlu0 %v1478, 16
        %v1494 = vpop.permute.xlu0 %1493
        %v1495 = vsel %vm695, %v1480, %v1488
        %v1496 = vsel %vm695, %v1482, %v1490
        %v1497 = vsel %vm695, %v1484, %v1492
        %v1498 = vsel %vm695, %v1486, %v1494
        %v1499 = vsel %vm695, %v1488, %v1480
        %v1500 = vsel %vm695, %v1490, %v1482
        %v1501 = vsel %vm695, %v1492, %v1484
        %v1502 = vsel %vm695, %v1494, %v1486
        %v1503 = vmul.f32 %v1499, %v708
        %v1504 = vmul.f32 %v1495, %v712
        %v1505 = vmul.f32 %v1500, %v708
        %v1506 = vmul.f32 %v1496, %v712
        %v1507 = vmul.f32 %v1501, %v708
        %v1508 = vmul.f32 %v1497, %v712
        %v1509 = vmul.f32 %v1502, %v708
        %v1510 = vmul.f32 %v1498, %v712
        %1511 = vset.pattern.permute.xlu0 3
        %1512 = vperm.xlu0 %1511, %v1319
        %v1513 = vpop.permute.xlu0 %1512
        %1515 = vset.pattern.permute.xlu0 3
        %1516 = vperm.xlu0 %1515, %v1320
        %v1517 = vpop.permute.xlu0 %1516
        %1519 = vset.pattern.permute.xlu0 3
        %1520 = vperm.xlu0 %1519, %v1321
        %v1521 = vpop.permute.xlu0 %1520
        %1523 = vset.pattern.permute.xlu0 3
        %1524 = vperm.xlu0 %1523, %v1322
        %v1525 = vpop.permute.xlu0 %1524
        %v1527 = vmul.f32 %v1513, %v1347
        %v1528 = vmul.f32 %v1513, %v1348
        %v1529 = vmul.f32 %v1517, %v1349
        %v1530 = vmul.f32 %v1517, %v1350
        %v1531 = vmul.f32 %v1521, %v1351
        %v1532 = vmul.f32 %v1521, %v1352
        %v1533 = vmul.f32 %v1525, %v1353
        %v1534 = vmul.f32 %v1525, %v1354
        %1535 = vset.pattern.permute.xlu0 4
        %1536 = vperm.xlu0 %1535, %v1319
        %v1537 = vpop.permute.xlu0 %1536
        %1539 = vset.pattern.permute.xlu0 4
        %1540 = vperm.xlu0 %1539, %v1320
        %v1541 = vpop.permute.xlu0 %1540
        %1543 = vset.pattern.permute.xlu0 4
        %1544 = vperm.xlu0 %1543, %v1321
        %v1545 = vpop.permute.xlu0 %1544
        %1547 = vset.pattern.permute.xlu0 4
        %1548 = vperm.xlu0 %1547, %v1322
        %v1549 = vpop.permute.xlu0 %1548
        %v1551 = vmul.f32 %v1537, %v1310
        %v1552 = vmul.f32 %v1537, %v1311
        %v1553 = vmul.f32 %v1541, %v1312
        %v1554 = vmul.f32 %v1541, %v1313
        %v1555 = vmul.f32 %v1545, %v1314
        %v1556 = vmul.f32 %v1545, %v1315
        %v1557 = vmul.f32 %v1549, %v1316
        %v1558 = vmul.f32 %v1549, %v1317
        %v1559 = vadd.f32 %v1527, %v1551
        %v1560 = vadd.f32 %v1528, %v1552
        %v1561 = vadd.f32 %v1529, %v1553
        %v1562 = vadd.f32 %v1530, %v1554
        %v1563 = vadd.f32 %v1531, %v1555
        %v1564 = vadd.f32 %v1532, %v1556
        %v1565 = vadd.f32 %v1533, %v1557
        %v1566 = vadd.f32 %v1534, %v1558
        %1567 = vset.pattern.permute.xlu0 5
        %1568 = vperm.xlu0 %1567, %v1319
        %v1569 = vpop.permute.xlu0 %1568
        %1571 = vset.pattern.permute.xlu0 5
        %1572 = vperm.xlu0 %1571, %v1320
        %v1573 = vpop.permute.xlu0 %1572
        %1575 = vset.pattern.permute.xlu0 5
        %1576 = vperm.xlu0 %1575, %v1321
        %v1577 = vpop.permute.xlu0 %1576
        %1579 = vset.pattern.permute.xlu0 5
        %1580 = vperm.xlu0 %1579, %v1322
        %v1581 = vpop.permute.xlu0 %1580
        %v1583 = vmul.f32 %v1569, %v1379
        %v1584 = vmul.f32 %v1569, %v1380
        %v1585 = vmul.f32 %v1573, %v1381
        %v1586 = vmul.f32 %v1573, %v1382
        %v1587 = vmul.f32 %v1577, %v1383
        %v1588 = vmul.f32 %v1577, %v1384
        %v1589 = vmul.f32 %v1581, %v1385
        %v1590 = vmul.f32 %v1581, %v1386
        %v1591 = vadd.f32 %v1559, %v1583
        %v1592 = vadd.f32 %v1560, %v1584
        %v1593 = vadd.f32 %v1561, %v1585
        %v1594 = vadd.f32 %v1562, %v1586
        %v1595 = vadd.f32 %v1563, %v1587
        %v1596 = vadd.f32 %v1564, %v1588
        %v1597 = vadd.f32 %v1565, %v1589
        %v1598 = vadd.f32 %v1566, %v1590
        %v1599 = vadd.f32 %v1503, %v1591
        %v1600 = vadd.f32 %v1504, %v1592
        %v1601 = vadd.f32 %v1505, %v1593
        %v1602 = vadd.f32 %v1506, %v1594
        %v1603 = vadd.f32 %v1507, %v1595
        %v1604 = vadd.f32 %v1508, %v1596
        %v1605 = vadd.f32 %v1509, %v1597
        %v1606 = vadd.f32 %v1510, %v1598
        %1607 = vset.pattern.permute.xlu0 6
        %1608 = vperm.xlu0 %1607, %v1319
        %v1609 = vpop.permute.xlu0 %1608
        %1611 = vset.pattern.permute.xlu0 6
        %1612 = vperm.xlu0 %1611, %v1320
        %v1613 = vpop.permute.xlu0 %1612
        %1615 = vset.pattern.permute.xlu0 6
        %1616 = vperm.xlu0 %1615, %v1321
        %v1617 = vpop.permute.xlu0 %1616
        %1619 = vset.pattern.permute.xlu0 6
        %1620 = vperm.xlu0 %1619, %v1322
        %v1621 = vpop.permute.xlu0 %1620
        %v1623 = vmul.f32 %v1609, %v1347
        %v1624 = vmul.f32 %v1609, %v1348
        %v1625 = vmul.f32 %v1613, %v1349
        %v1626 = vmul.f32 %v1613, %v1350
        %v1627 = vmul.f32 %v1617, %v1351
        %v1628 = vmul.f32 %v1617, %v1352
        %v1629 = vmul.f32 %v1621, %v1353
        %v1630 = vmul.f32 %v1621, %v1354
        %1631 = vset.pattern.permute.xlu0 7
        %1632 = vperm.xlu0 %1631, %v1319
        %v1633 = vpop.permute.xlu0 %1632
        %1635 = vset.pattern.permute.xlu0 7
        %1636 = vperm.xlu0 %1635, %v1320
        %v1637 = vpop.permute.xlu0 %1636
        %1639 = vset.pattern.permute.xlu0 7
        %1640 = vperm.xlu0 %1639, %v1321
        %v1641 = vpop.permute.xlu0 %1640
        %1643 = vset.pattern.permute.xlu0 7
        %1644 = vperm.xlu0 %1643, %v1322
        %v1645 = vpop.permute.xlu0 %1644
        %v1647 = vmul.f32 %v1633, %v1310
        %v1648 = vmul.f32 %v1633, %v1311
        %v1649 = vmul.f32 %v1637, %v1312
        %v1650 = vmul.f32 %v1637, %v1313
        %v1651 = vmul.f32 %v1641, %v1314
        %v1652 = vmul.f32 %v1641, %v1315
        %v1653 = vmul.f32 %v1645, %v1316
        %v1654 = vmul.f32 %v1645, %v1317
        %v1655 = vadd.f32 %v1623, %v1647
        %v1656 = vadd.f32 %v1624, %v1648
        %v1657 = vadd.f32 %v1625, %v1649
        %v1658 = vadd.f32 %v1626, %v1650
        %v1659 = vadd.f32 %v1627, %v1651
        %v1660 = vadd.f32 %v1628, %v1652
        %v1661 = vadd.f32 %v1629, %v1653
        %v1662 = vadd.f32 %v1630, %v1654
        %1663 = vset.pattern.permute.xlu0 8
        %1664 = vperm.xlu0 %1663, %v1319
        %v1665 = vpop.permute.xlu0 %1664
        %1667 = vset.pattern.permute.xlu0 8
        %1668 = vperm.xlu0 %1667, %v1320
        %v1669 = vpop.permute.xlu0 %1668
        %1671 = vset.pattern.permute.xlu0 8
        %1672 = vperm.xlu0 %1671, %v1321
        %v1673 = vpop.permute.xlu0 %1672
        %1675 = vset.pattern.permute.xlu0 8
        %1676 = vperm.xlu0 %1675, %v1322
        %v1677 = vpop.permute.xlu0 %1676
        %v1679 = vmul.f32 %v1665, %v1379
        %v1680 = vmul.f32 %v1665, %v1380
        %v1681 = vmul.f32 %v1669, %v1381
        %v1682 = vmul.f32 %v1669, %v1382
        %v1683 = vmul.f32 %v1673, %v1383
        %v1684 = vmul.f32 %v1673, %v1384
        %v1685 = vmul.f32 %v1677, %v1385
        %v1686 = vmul.f32 %v1677, %v1386
        %v1687 = vadd.f32 %v1655, %v1679
        %v1688 = vadd.f32 %v1656, %v1680
        %v1689 = vadd.f32 %v1657, %v1681
        %v1690 = vadd.f32 %v1658, %v1682
        %v1691 = vadd.f32 %v1659, %v1683
        %v1692 = vadd.f32 %v1660, %v1684
        %v1693 = vadd.f32 %v1661, %v1685
        %v1694 = vadd.f32 %v1662, %v1686
        %1695 = vrot.lane.b32.xlu0 %v1687, 112
        %v1696 = vpop.permute.xlu0 %1695
        %1697 = vrot.lane.b32.xlu0 %v1689, 112
        %v1698 = vpop.permute.xlu0 %1697
        %1699 = vrot.lane.b32.xlu0 %v1691, 112
        %v1700 = vpop.permute.xlu0 %1699
        %1701 = vrot.lane.b32.xlu0 %v1693, 112
        %v1702 = vpop.permute.xlu0 %1701
        %1703 = vrot.lane.b32.xlu0 %v1688, 112
        %v1704 = vpop.permute.xlu0 %1703
        %1705 = vrot.lane.b32.xlu0 %v1690, 112
        %v1706 = vpop.permute.xlu0 %1705
        %1707 = vrot.lane.b32.xlu0 %v1692, 112
        %v1708 = vpop.permute.xlu0 %1707
        %1709 = vrot.lane.b32.xlu0 %v1694, 112
        %v1710 = vpop.permute.xlu0 %1709
        %v1711 = vsel %vm923, %v1696, %v1704
        %v1712 = vsel %vm923, %v1698, %v1706
        %v1713 = vsel %vm923, %v1700, %v1708
        %v1714 = vsel %vm923, %v1702, %v1710
        %v1715 = vsel %vm923, %v1704, %v1696
        %v1716 = vsel %vm923, %v1706, %v1698
        %v1717 = vsel %vm923, %v1708, %v1700
        %v1718 = vsel %vm923, %v1710, %v1702
        %v1719 = vmul.f32 %v1711, %v936
        %v1720 = vmul.f32 %v1715, %v940
        %v1721 = vmul.f32 %v1712, %v936
        %v1722 = vmul.f32 %v1716, %v940
        %v1723 = vmul.f32 %v1713, %v936
        %v1724 = vmul.f32 %v1717, %v940
        %v1725 = vmul.f32 %v1714, %v936
        %v1726 = vmul.f32 %v1718, %v940
        %v1727 = vadd.f32 %v1599, %v1719
        %v1728 = vadd.f32 %v1600, %v1720
        %v1729 = vadd.f32 %v1601, %v1721
        %v1730 = vadd.f32 %v1602, %v1722
        %v1731 = vadd.f32 %v1603, %v1723
        %v1732 = vadd.f32 %v1604, %v1724
        %v1733 = vadd.f32 %v1605, %v1725
        %v1734 = vadd.f32 %v1606, %v1726
        %s1735 = scalar_lea.vmem %s5, 32
        %v1736 = vld [vmem:[%s1735] sm:$0xff]
        %v1737 = vld [vmem:[%s1735 + $0x8] sm:$0xff]
        %v1738 = vld [vmem:[%s1735 + $0x10] sm:$0xff]
        %v1739 = vld [vmem:[%s1735 + $0x18] sm:$0xff]
        %1741 = vset.pattern.permute.xlu0 0
        %1742 = vperm.xlu0 %1741, %v1736
        %v1743 = vpop.permute.xlu0 %1742
        %1746 = vset.pattern.permute.xlu0 0
        %1747 = vperm.xlu0 %1746, %v1737
        %v1748 = vpop.permute.xlu0 %1747
        %1751 = vset.pattern.permute.xlu0 0
        %1752 = vperm.xlu0 %1751, %v1738
        %v1753 = vpop.permute.xlu0 %1752
        %1756 = vset.pattern.permute.xlu0 0
        %1757 = vperm.xlu0 %1756, %v1739
        %v1758 = vpop.permute.xlu0 %1757
        %v1760 = vadd.f32 %v1727, %v1743
        %v1761 = vadd.f32 %v1728, %v1743
        %v1762 = vadd.f32 %v1729, %v1748
        %v1763 = vadd.f32 %v1730, %v1748
        %v1764 = vadd.f32 %v1731, %v1753
        %v1765 = vadd.f32 %v1732, %v1753
        %v1766 = vadd.f32 %v1733, %v1758
        %v1767 = vadd.f32 %v1734, %v1758
        %v1768 = vmul.f32 %v1760, 0.5
        %v1769 = vmul.f32 %v1761, 0.5
        %v1770 = vmul.f32 %v1762, 0.5
        %v1771 = vmul.f32 %v1763, 0.5
        %v1772 = vmul.f32 %v1764, 0.5
        %v1773 = vmul.f32 %v1765, 0.5
        %v1774 = vmul.f32 %v1766, 0.5
        %v1775 = vmul.f32 %v1767, 0.5
        %v1776 = vmul.f32 %v1760, 0.044715
        %v1777 = vmul.f32 %v1761, 0.044715
        %v1778 = vmul.f32 %v1762, 0.044715
        %v1779 = vmul.f32 %v1763, 0.044715
        %v1780 = vmul.f32 %v1764, 0.044715
        %v1781 = vmul.f32 %v1765, 0.044715
        %v1782 = vmul.f32 %v1766, 0.044715
        %v1783 = vmul.f32 %v1767, 0.044715
        %v1784 = vmul.f32 %v1776, %v1760
        %v1785 = vmul.f32 %v1777, %v1761
        %v1786 = vmul.f32 %v1778, %v1762
        %v1787 = vmul.f32 %v1779, %v1763
        %v1788 = vmul.f32 %v1780, %v1764
        %v1789 = vmul.f32 %v1781, %v1765
        %v1790 = vmul.f32 %v1782, %v1766
        %v1791 = vmul.f32 %v1783, %v1767
        %v1792 = vmul.f32 %v1784, %v1760
        %v1793 = vmul.f32 %v1785, %v1761
        %v1794 = vmul.f32 %v1786, %v1762
        %v1795 = vmul.f32 %v1787, %v1763
        %v1796 = vmul.f32 %v1788, %v1764
        %v1797 = vmul.f32 %v1789, %v1765
        %v1798 = vmul.f32 %v1790, %v1766
        %v1799 = vmul.f32 %v1791, %v1767
        %v1800 = vadd.f32 %v1760, %v1792
        %v1801 = vadd.f32 %v1761, %v1793
        %v1802 = vadd.f32 %v1762, %v1794
        %v1803 = vadd.f32 %v1763, %v1795
        %v1804 = vadd.f32 %v1764, %v1796
        %v1805 = vadd.f32 %v1765, %v1797
        %v1806 = vadd.f32 %v1766, %v1798
        %v1807 = vadd.f32 %v1767, %v1799
        %v1808 = vmul.f32 %v1800, 0.7978846
        %v1809 = vmul.f32 %v1801, 0.7978846
        %v1810 = vmul.f32 %v1802, 0.7978846
        %v1811 = vmul.f32 %v1803, 0.7978846
        %v1812 = vmul.f32 %v1804, 0.7978846
        %v1813 = vmul.f32 %v1805, 0.7978846
        %v1814 = vmul.f32 %v1806, 0.7978846
        %v1815 = vmul.f32 %v1807, 0.7978846
        %v1816 = vtanh.pop %v1808
        %v1817 = vtanh.pop %v1809
        %v1818 = vtanh.pop %v1810
        %v1819 = vtanh.pop %v1811
        %v1820 = vtanh.pop %v1812
        %v1821 = vtanh.pop %v1813
        %v1822 = vtanh.pop %v1814
        %v1823 = vtanh.pop %v1815
        %v1824 = vadd.f32 %v1816, 1.0
        %v1825 = vadd.f32 %v1817, 1.0
        %v1826 = vadd.f32 %v1818, 1.0
        %v1827 = vadd.f32 %v1819, 1.0
        %v1828 = vadd.f32 %v1820, 1.0
        %v1829 = vadd.f32 %v1821, 1.0
        %v1830 = vadd.f32 %v1822, 1.0
        %v1831 = vadd.f32 %v1823, 1.0
        %v1832 = vmul.f32 %v1768, %v1824
        %v1833 = vmul.f32 %v1769, %v1825
        %v1834 = vmul.f32 %v1770, %v1826
        %v1835 = vmul.f32 %v1771, %v1827
        %v1836 = vmul.f32 %v1772, %v1828
        %v1837 = vmul.f32 %v1773, %v1829
        %v1838 = vmul.f32 %v1774, %v1830
        %v1839 = vmul.f32 %v1775, %v1831
        %s1840 = scalar_lea.vmem %s6, 4
        %v1841 = vld [vmem:[%s1840] sm:$0xf]
        %v1842 = vpack.c.bf16 %v1834, %v1832
        %v1843 = vpack.c.bf16 %v1835, %v1833
        %v1844 = vpack.c.bf16 %v1838, %v1836
        %v1845 = vpack.c.bf16 %v1839, %v1837
        %s1846 = scalar_lea.vmem %s7, 8
        %v1847 = vld [vmem:[%s1846] sm:$0xff]
        %1849 = vset.pattern.permute.xlu0 0
        %1850 = vperm.xlu0 %1849, %v1847
        %v1851 = vpop.permute.xlu0 %1850
        %v1854 = vsel %vm1074, %v1841, 0
        %1856 = vmatprep.subr.bf16.mxu0 %v1843
        %1857 = vmatpush1.bf16.msra.mxu0 %v1842
        %1858 = vmatprep.subr.bf16.mxu0 %v1845
        %1859 = vmatpush1.bf16.msra.mxu0 %v1844
        %1860 = vmatprep.subr.bf16.mxu0 0
        %1861 = vmatpush1.bf16.msra.mxu0 0
        %1862 = vmatprep.subr.bf16.mxu0 0
        %1863 = vmatpush1.bf16.msra.mxu0 0
        %1864 = vmatprep.subr.bf16.mxu0 0
        %1865 = vmatpush1.bf16.msra.mxu0 0
        %1866 = vmatprep.subr.bf16.mxu0 0
        %1867 = vmatpush1.bf16.msra.mxu0 0
        %1868 = vmatprep.subr.bf16.mxu0 0
        %1869 = vmatpush1.bf16.msra.mxu0 0
        %1870 = vmatprep.subr.bf16.mxu0 0
        %1871 = vmatpush1.bf16.msra.mxu0 0
        %1872 = vmatprep.subr.bf16.mxu0 0
        %1873 = vmatpush1.bf16.msra.mxu0 0
        %1874 = vmatprep.subr.bf16.mxu0 0
        %1875 = vmatpush1.bf16.msra.mxu0 0
        %1876 = vmatprep.subr.bf16.mxu0 0
        %1877 = vmatpush1.bf16.msra.mxu0 0
        %1878 = vmatprep.subr.bf16.mxu0 0
        %1879 = vmatpush1.bf16.msra.mxu0 0
        %1880 = vmatprep.subr.bf16.mxu0 0
        %1881 = vmatpush1.bf16.msra.mxu0 0
        %1882 = vmatprep.subr.bf16.mxu0 0
        %1883 = vmatpush1.bf16.msra.mxu0 0
        %1884 = vmatprep.subr.bf16.mxu0 0
        %1885 = vmatpush1.bf16.msra.mxu0 0
        %1886 = vmatprep.subr.bf16.mxu0 0
        %1887 = vmatpush1.bf16.msra.mxu0 0
        %1888 = vmatprep.mubr.bf16.mxu0 0
        %1889 = vmatmul.mubr.bf16.gmra.mrb[0].mxu0 %v1854
        %v1890 = vpop.f32.mrb[0].mxu0
        %v1891 = vadd.f32 %v1851, %v1890
        %v1892 = vpop.f32.mrb[0].mxu0
        %v1893 = vadd.f32 %v1851, %v1892
        %v1894 = vpop.f32.mrb[0].mxu0
        %v1895 = vpop.f32.mrb[0].mxu0
        %1896 = vdwg.mxu0
        %v1897 = vadd.f32 %v1891, %v1137
        %v1898 = vadd.f32 %v1893, %v1138
        %v1899 = vmul.f32 %v1897, 0.5
        %v1900 = vmul.f32 %v1898, 0.5
        %v1901 = vmul.f32 %v1897, 0.044715
        %v1902 = vmul.f32 %v1898, 0.044715
        %v1903 = vmul.f32 %v1901, %v1897
        %v1904 = vmul.f32 %v1902, %v1898
        %v1905 = vmul.f32 %v1903, %v1897
        %v1906 = vmul.f32 %v1904, %v1898
        %v1907 = vadd.f32 %v1897, %v1905
        %v1908 = vadd.f32 %v1898, %v1906
        %v1909 = vmul.f32 %v1907, 0.7978846
        %v1910 = vmul.f32 %v1908, 0.7978846
        %v1911 = vtanh.pop %v1909
        %v1912 = vtanh.pop %v1910
        %v1913 = vadd.f32 %v1911, 1.0
        %v1914 = vadd.f32 %v1912, 1.0
        %v1915 = vmul.f32 %v1899, %v1913
        %v1916 = vmul.f32 %v1900, %v1914
        %1917 = vst [vmem:[%s298] sm:$0xff] %v1915
        %1918 = vst [vmem:[%s298 + $0x8] sm:$0xff] %v1916
        %s1919 = sand.u32 %s203, 1
        %s1920 = scalar_lea.sflag [#allocation3], %s1919
        %s1921 = sand.u32 %s203, 1
        %s1922 = smul.addr %s1921, 16
        %s1923 = scalar_lea.vmem [#allocation2], %s1922
        // Predicated region
        $region53: #{tpu_custom_call.1} parent=51 // pred_check
          %p1924 = pneg %p213
        $region54: #{tpu_custom_call.1} parent=51 // pred_check_branch
          %1926 = sbr.rel (%p1924) target = $region56
        $region55: #{tpu_custom_call.1} parent=51 // pred_region
          %s1928 = ssub.s32 256, 256
          %1929 = vsyncadd %s1920, %s1928
          %s1930 = smul.addr %s22, 2
          %s1931 = smul.addr %s1930, 128
          %s1932 = scalar_lea.hbm %s8, %s1931
          %s1934 = sshll.u32 %s1923, 4
          %s1935 = int_to_ptr.vmem [resolvable:$true] %s1934
          %1937 = dma.vmem_to_hbm [thread:$0]  %s1935, 256, %s1932, %s1920
        $region56: #{tpu_custom_call.1} parent=51 // pred_fallthru
          _
      $region52: #{tpu_custom_call.1} parent=5 // pred_fallthru
        _
      %p1938 = scmp.le.s32.totalorder 2, %s17
      // Predicated region
      $region57: #{tpu_custom_call.1} parent=5 // pred_check
        %p1939 = pneg %p1938
      $region58: #{tpu_custom_call.1} parent=5 // pred_check_branch
        %1941 = sbr.rel (%p1939) target = $region60
      $region59: #{tpu_custom_call.1} parent=5 // pred_region
        %s1942 = ssub.s32 %s17, 2
        // Predicated region
        $region61: #{tpu_custom_call.1} parent=59 // pred_check
          %p1943 = pneg %p219
        $region62: #{tpu_custom_call.1} parent=59 // pred_check_branch
          %1945 = sbr.rel (%p1943) target = $region64
        $region63: #{tpu_custom_call.1} parent=59 // pred_region
          %s1946 = sand.u32 %s204, 1
          %s1947 = scalar_lea.sflag [#allocation3], %s1946
          %s1948 = sand.u32 %s204, 1
          %s1949 = smul.addr %s1948, 16
          %s1950 = scalar_lea.vmem [#allocation2], %s1949
          %1951 = dma.done %s1947, 256
        $region64: #{tpu_custom_call.1} parent=59 // pred_fallthru
          _
      $region60: #{tpu_custom_call.1} parent=5 // pred_fallthru
        _
    $region6: #{tpu_custom_call.1} parent=1 // loop_footer
      %s21 = sadd.s32 1, %s17
    $region7: #{tpu_custom_call.1} parent=1 // loop_footer_branch
      %16 = sbr.rel target = $region3
    $region8: #{tpu_custom_call.1} parent=1 // loop_exit
      _
    %1952 = vsyncpa [#allocation3], 1
    %s1953 = scalar_lea.sflag [#allocation3], 1
    %1954 = vsyncpa %s1953, 1

</llo_original>
